<compile_context>
chip_gen: v5e
topology: v5e:2x2
jax: 0.10.0
libtpu: 0.0.40
codegen_flags: <defaults>
</compile_context>

<pallas_src>
import jax
import jax.numpy as jnp
from jax import lax
from jax.experimental import pallas as pl
from jax.experimental.pallas import tpu as pltpu  # noqa: F401  (TPU backend)

IN_FEATURES = 3 * 64 * 64   # 12288
OUT_FEATURES = 6


def linear_kernel(x_ref, w_ref, b_ref, o_ref):
    """y = x @ W^T + b, computed in one shot (everything resident in VMEM).

    x_ref: (B, K) f32    w_ref: (N, K) f32 (torch layout, un-transposed)
    b_ref: (1, N) f32    o_ref: (B, N)
    Contraction is over the last axis of BOTH operands -> x @ W^T.
    """
    acc = lax.dot_general(
        x_ref[...], w_ref[...],
        dimension_numbers=(((1,), (1,)), ((), ())),
        preferred_element_type=jnp.float32,
    )
    o_ref[...] = (acc + b_ref[...]).astype(o_ref.dtype)


def linear_classifier(x, weight, bias):
    """x: (B, 3, 64, 64) f32; weight: (OUT, IN) as in torch; bias: (OUT,)."""
    B = x.shape[0]
    x_flat = x.reshape(B, IN_FEATURES)          # row-major flatten == torch .view
    b2 = bias.reshape(1, OUT_FEATURES)
    K = IN_FEATURES

    itemsize = jnp.dtype(x.dtype).itemsize
    cost = pl.CostEstimate(
        flops=2 * B * K * OUT_FEATURES,
        transcendentals=0,
        bytes_accessed=(x_flat.size + weight.size + b2.size
                        + B * OUT_FEATURES) * itemsize,
    )

    return pl.pallas_call(
        linear_kernel,
        out_shape=jax.ShapeDtypeStruct((B, OUT_FEATURES), x.dtype),
        # No grid: one invocation, full arrays resident in VMEM.
        in_specs=[
            pl.BlockSpec((B, K), lambda: (0, 0)),               # x, K on lanes
            pl.BlockSpec((OUT_FEATURES, K), lambda: (0, 0)),    # W (6, K), lane-dense
            pl.BlockSpec((1, OUT_FEATURES), lambda: (0, 0)),    # bias
        ],
        out_specs=pl.BlockSpec((B, OUT_FEATURES), lambda: (0, 0)),
        cost_estimate=cost,
    )(x_flat, weight, b2)


if __name__ == "__main__":
    key = jax.random.PRNGKey(0)
    kx, kw, kb = jax.random.split(key, 3)

    B = 2
    x = jax.random.normal(kx, (B, 3, 64, 64), dtype=jnp.float32)

    # Same shapes / init law as torch.nn.Linear: U(-1/sqrt(in), 1/sqrt(in))
    bound = 1.0 / jnp.sqrt(jnp.float32(IN_FEATURES))
    weight = jax.random.uniform(
        kw, (OUT_FEATURES, IN_FEATURES), dtype=jnp.float32,
        minval=-bound, maxval=bound)
    bias = jax.random.uniform(
        kb, (OUT_FEATURES,), dtype=jnp.float32, minval=-bound, maxval=bound)

    out = linear_classifier(x, weight, bias)
    out = jax.block_until_ready(out)

    # Reference check in plain JAX
    ref = x.reshape(B, -1) @ weight.T + bias
    assert out.shape == (B, OUT_FEATURES)
    assert jnp.allclose(out, ref, atol=1e-4, rtol=1e-4)

    print("KERNEL_OK")
</pallas_src>

<mosaic_0001>
module attributes {stable_mosaic.version = 11 : i64} {
  func.func @linear_kernel(%arg0: memref<2x12288xf32, #tpu.memory_space<vmem>>, %arg1: memref<6x12288xf32, #tpu.memory_space<vmem>>, %arg2: memref<1x6xf32, #tpu.memory_space<vmem>>, %arg3: memref<2x6xf32, #tpu.memory_space<vmem>>) attributes {dimension_semantics = [], scalar_prefetch = 0 : i64, scratch_operands = 0 : i64, tpu.core_type = #tpu.core_type<tc>} {
    %c0 = arith.constant 0 : index
    %c0_0 = arith.constant 0 : index
    %0 = vector.load %arg0[%c0, %c0_0] : memref<2x12288xf32, #tpu.memory_space<vmem>>, vector<2x12288xf32>
    %c0_1 = arith.constant 0 : index
    %c0_2 = arith.constant 0 : index
    %1 = vector.load %arg1[%c0_1, %c0_2] : memref<6x12288xf32, #tpu.memory_space<vmem>>, vector<6x12288xf32>
    %cst = arith.constant dense<0.000000e+00> : vector<2x6xf32>
    %2 = tpu.matmul %0, %1, %cst {dimension_numbers = #tpu.dot_dimension_numbers<[1], [1], [0], [0], [0, 0, 1, 0], [], []>} : vector<2x12288xf32>, vector<6x12288xf32>, vector<2x6xf32> -> vector<2x6xf32>
    %c0_3 = arith.constant 0 : index
    %c0_4 = arith.constant 0 : index
    %3 = vector.load %arg2[%c0_3, %c0_4] : memref<1x6xf32, #tpu.memory_space<vmem>>, vector<1x6xf32>
    %4 = vector.broadcast %3 : vector<1x6xf32> to vector<2x6xf32>
    %5 = arith.addf %2, %4 : vector<2x6xf32>
    %c0_5 = arith.constant 0 : index
    %c0_6 = arith.constant 0 : index
    %6 = vector.load %arg3[%c0_5, %c0_6] : memref<2x6xf32, #tpu.memory_space<vmem>>, vector<2x6xf32>
    tpu.vector_store %arg3[%c0_5, %c0_6], %5 {strides = array<i32>} : memref<2x6xf32, #tpu.memory_space<vmem>>, vector<2x6xf32>,
    return
  }
}

</mosaic_0001>

<llo_original>
// kernel: tpu_custom_call.1
$region0: #{tpu_custom_call.1}
  #allocation0 [shape = 'u32[]', space=smem, size = 0x4, offset = 0x4, fixed_abs, tag = 'smem constant byte address 0x4 - core index']
  #allocation1 [shape = 'u32[72,128]{1,0:T(1,128)}', space=vmem, size = 0x9000, scoped, tag = 'internal scratch']
  %s0 = inlined_call_operand.hbm [shape: f32[2,12288], index: 0, kind: input, shape index: {}]
  %s1 = inlined_call_operand.hbm [shape: f32[6,12288], index: 1, kind: input, shape index: {}]
  %s2 = inlined_call_operand.vmem [shape: f32[1,6], index: 2, kind: input, shape index: {}]
  %s3 = inlined_call_operand.hbm [shape: f32[2,6], index: 3, kind: output, shape index: {}]
  %s4 = sld [smem:[#allocation0]]
  $region30: #{tpu_custom_call.1} parent=0
    _
  %s6 = ssub.s32 1, %s4
  %s7 = scalar_select 0, %s6, %s4
  $region1: #{tpu_custom_call.1} parent=0
    #allocation2 [shape = 'u8[98304]{0}', space=vmem, size = 0x18000, scoped, tag = 'input window, operand 0, single buffered']
    #allocation3 [shape = 's32[1]{0}', space=sflag, size = 0x4, scoped, tag = 'scoped memory for tpu_custom_call.1']
    #allocation4 [shape = 's32[1]{0}', space=sflag, size = 0x4, scoped, tag = 'scoped memory for tpu_custom_call.1']
    #allocation5 [shape = 'u8[393216]{0}', space=vmem, size = 0x60000, scoped, tag = 'input window, operand 1, single buffered']
    #allocation6 [shape = 's32[1]{0}', space=sflag, size = 0x4, scoped, tag = 'scoped memory for tpu_custom_call.1']
    #allocation7 [shape = 'u8[1024]{0}', space=vmem, size = 0x400, scoped, tag = 'output window, operand 0, single buffered']
    %8 = vsyncpa [#allocation3], 0
    %9 = vsyncpa [#allocation6], 0
    %10 = vsyncpa [#allocation4], 0
    // Predicated region
    $region2: #{tpu_custom_call.1} parent=1 // pred_check
      _
    $region3: #{tpu_custom_call.1} parent=1 // pred_check_branch
      %12 = sbr.rel (0) target = $region5
    $region4: #{tpu_custom_call.1} parent=1 // pred_region
      %14 = vsyncadd [#allocation3], 0
      %s16 = sshll.u32 %s0, 4
      %s17 = int_to_ptr.hbm [resolvable:$true] %s16
      %s18 = sshll.u32 [#allocation2], 4
      %s19 = int_to_ptr.vmem [resolvable:$true] %s18
      %21 = dma.hbm_to_vmem [thread:$0]  %s17, 3072, %s19, [#allocation3]
    $region5: #{tpu_custom_call.1} parent=1 // pred_fallthru
      _
    // Predicated region
    $region6: #{tpu_custom_call.1} parent=1 // pred_check
      _
    $region7: #{tpu_custom_call.1} parent=1 // pred_check_branch
      %23 = sbr.rel (0) target = $region9
    $region8: #{tpu_custom_call.1} parent=1 // pred_region
      %25 = vsyncadd [#allocation6], 0
      %s27 = sshll.u32 %s1, 4
      %s28 = int_to_ptr.hbm [resolvable:$true] %s27
      %s29 = sshll.u32 [#allocation5], 4
      %s30 = int_to_ptr.vmem [resolvable:$true] %s29
      %32 = dma.hbm_to_vmem [thread:$0]  %s28, 12288, %s30, [#allocation6]
    $region9: #{tpu_custom_call.1} parent=1 // pred_fallthru
      _
    // Predicated region
    $region10: #{tpu_custom_call.1} parent=1 // pred_check
      _
    $region11: #{tpu_custom_call.1} parent=1 // pred_check_branch
      %34 = sbr.rel (0) target = $region13
    $region12: #{tpu_custom_call.1} parent=1 // pred_region
      _
    $region13: #{tpu_custom_call.1} parent=1 // pred_fallthru
      _
    // Predicated region
    $region14: #{tpu_custom_call.1} parent=1 // pred_check
      _
    $region15: #{tpu_custom_call.1} parent=1 // pred_check_branch
      %36 = sbr.rel (0) target = $region17
    $region16: #{tpu_custom_call.1} parent=1 // pred_region
      %38 = dma.done [#allocation3], 3072
    $region17: #{tpu_custom_call.1} parent=1 // pred_fallthru
      _
    // Predicated region
    $region18: #{tpu_custom_call.1} parent=1 // pred_check
      _
    $region19: #{tpu_custom_call.1} parent=1 // pred_check_branch
      %40 = sbr.rel (0) target = $region21
    $region20: #{tpu_custom_call.1} parent=1 // pred_region
      %42 = dma.done [#allocation6], 12288
    $region21: #{tpu_custom_call.1} parent=1 // pred_fallthru
      _
    %v43 = vld [vmem:[#allocation2] sm:$0xff]
    %v44 = vld [vmem:[#allocation2 + $0x8] sm:$0xff]
    %v45 = vld [vmem:[#allocation2 + $0x10] sm:$0xff]
    %v46 = vld [vmem:[#allocation2 + $0x18] sm:$0xff]
    %v47 = vld [vmem:[#allocation2 + $0x20] sm:$0xff]
    %v48 = vld [vmem:[#allocation2 + $0x28] sm:$0xff]
    %v49 = vld [vmem:[#allocation2 + $0x30] sm:$0xff]
    %v50 = vld [vmem:[#allocation2 + $0x38] sm:$0xff]
    %v51 = vld [vmem:[#allocation2 + $0x40] sm:$0xff]
    %v52 = vld [vmem:[#allocation2 + $0x48] sm:$0xff]
    %v53 = vld [vmem:[#allocation2 + $0x50] sm:$0xff]
    %v54 = vld [vmem:[#allocation2 + $0x58] sm:$0xff]
    %v55 = vld [vmem:[#allocation2 + $0x60] sm:$0xff]
    %v56 = vld [vmem:[#allocation2 + $0x68] sm:$0xff]
    %v57 = vld [vmem:[#allocation2 + $0x70] sm:$0xff]
    %v58 = vld [vmem:[#allocation2 + $0x78] sm:$0xff]
    %v59 = vld [vmem:[#allocation2 + $0x80] sm:$0xff]
    %v60 = vld [vmem:[#allocation2 + $0x88] sm:$0xff]
    %v61 = vld [vmem:[#allocation2 + $0x90] sm:$0xff]
    %v62 = vld [vmem:[#allocation2 + $0x98] sm:$0xff]
    %v63 = vld [vmem:[#allocation2 + $0xa0] sm:$0xff]
    %v64 = vld [vmem:[#allocation2 + $0xa8] sm:$0xff]
    %v65 = vld [vmem:[#allocation2 + $0xb0] sm:$0xff]
    %v66 = vld [vmem:[#allocation2 + $0xb8] sm:$0xff]
    %v67 = vld [vmem:[#allocation5] sm:$0x3f]
    %v68 = vld [vmem:[#allocation5 + $0x8] sm:$0x3f]
    %v69 = vld [vmem:[#allocation5 + $0x10] sm:$0x3f]
    %v70 = vld [vmem:[#allocation5 + $0x18] sm:$0x3f]
    %v71 = vld [vmem:[#allocation5 + $0x20] sm:$0x3f]
    %v72 = vld [vmem:[#allocation5 + $0x28] sm:$0x3f]
    %v73 = vld [vmem:[#allocation5 + $0x30] sm:$0x3f]
    %v74 = vld [vmem:[#allocation5 + $0x38] sm:$0x3f]
    %v75 = vld [vmem:[#allocation5 + $0x40] sm:$0x3f]
    %v76 = vld [vmem:[#allocation5 + $0x48] sm:$0x3f]
    %v77 = vld [vmem:[#allocation5 + $0x50] sm:$0x3f]
    %v78 = vld [vmem:[#allocation5 + $0x58] sm:$0x3f]
    %v79 = vld [vmem:[#allocation5 + $0x60] sm:$0x3f]
    %v80 = vld [vmem:[#allocation5 + $0x68] sm:$0x3f]
    %v81 = vld [vmem:[#allocation5 + $0x70] sm:$0x3f]
    %v82 = vld [vmem:[#allocation5 + $0x78] sm:$0x3f]
    %v83 = vld [vmem:[#allocation5 + $0x80] sm:$0x3f]
    %v84 = vld [vmem:[#allocation5 + $0x88] sm:$0x3f]
    %v85 = vld [vmem:[#allocation5 + $0x90] sm:$0x3f]
    %v86 = vld [vmem:[#allocation5 + $0x98] sm:$0x3f]
    %v87 = vld [vmem:[#allocation5 + $0xa0] sm:$0x3f]
    %v88 = vld [vmem:[#allocation5 + $0xa8] sm:$0x3f]
    %v89 = vld [vmem:[#allocation5 + $0xb0] sm:$0x3f]
    %v90 = vld [vmem:[#allocation5 + $0xb8] sm:$0x3f]
    %v91 = vld [vmem:[#allocation5 + $0xc0] sm:$0x3f]
    %v92 = vld [vmem:[#allocation5 + $0xc8] sm:$0x3f]
    %v93 = vld [vmem:[#allocation5 + $0xd0] sm:$0x3f]
    %v94 = vld [vmem:[#allocation5 + $0xd8] sm:$0x3f]
    %v95 = vld [vmem:[#allocation5 + $0xe0] sm:$0x3f]
    %v96 = vld [vmem:[#allocation5 + $0xe8] sm:$0x3f]
    %v97 = vld [vmem:[#allocation5 + $0xf0] sm:$0x3f]
    %v98 = vld [vmem:[#allocation5 + $0xf8] sm:$0x3f]
    %v99 = vld [vmem:[#allocation5 + $0x100] sm:$0x3f]
    %v100 = vld [vmem:[#allocation5 + $0x108] sm:$0x3f]
    %v101 = vld [vmem:[#allocation5 + $0x110] sm:$0x3f]
    %v102 = vld [vmem:[#allocation5 + $0x118] sm:$0x3f]
    %v103 = vld [vmem:[#allocation5 + $0x120] sm:$0x3f]
    %v104 = vld [vmem:[#allocation5 + $0x128] sm:$0x3f]
    %v105 = vld [vmem:[#allocation5 + $0x130] sm:$0x3f]
    %v106 = vld [vmem:[#allocation5 + $0x138] sm:$0x3f]
    %v107 = vld [vmem:[#allocation5 + $0x140] sm:$0x3f]
    %v108 = vld [vmem:[#allocation5 + $0x148] sm:$0x3f]
    %v109 = vld [vmem:[#allocation5 + $0x150] sm:$0x3f]
    %v110 = vld [vmem:[#allocation5 + $0x158] sm:$0x3f]
    %v111 = vld [vmem:[#allocation5 + $0x160] sm:$0x3f]
    %v112 = vld [vmem:[#allocation5 + $0x168] sm:$0x3f]
    %v113 = vld [vmem:[#allocation5 + $0x170] sm:$0x3f]
    %v114 = vld [vmem:[#allocation5 + $0x178] sm:$0x3f]
    %v115 = vld [vmem:[#allocation5 + $0x180] sm:$0x3f]
    %v116 = vld [vmem:[#allocation5 + $0x188] sm:$0x3f]
    %v117 = vld [vmem:[#allocation5 + $0x190] sm:$0x3f]
    %v118 = vld [vmem:[#allocation5 + $0x198] sm:$0x3f]
    %v119 = vld [vmem:[#allocation5 + $0x1a0] sm:$0x3f]
    %v120 = vld [vmem:[#allocation5 + $0x1a8] sm:$0x3f]
    %v121 = vld [vmem:[#allocation5 + $0x1b0] sm:$0x3f]
    %v122 = vld [vmem:[#allocation5 + $0x1b8] sm:$0x3f]
    %v123 = vld [vmem:[#allocation5 + $0x1c0] sm:$0x3f]
    %v124 = vld [vmem:[#allocation5 + $0x1c8] sm:$0x3f]
    %v125 = vld [vmem:[#allocation5 + $0x1d0] sm:$0x3f]
    %v126 = vld [vmem:[#allocation5 + $0x1d8] sm:$0x3f]
    %v127 = vld [vmem:[#allocation5 + $0x1e0] sm:$0x3f]
    %v128 = vld [vmem:[#allocation5 + $0x1e8] sm:$0x3f]
    %v129 = vld [vmem:[#allocation5 + $0x1f0] sm:$0x3f]
    %v130 = vld [vmem:[#allocation5 + $0x1f8] sm:$0x3f]
    %v131 = vld [vmem:[#allocation5 + $0x200] sm:$0x3f]
    %v132 = vld [vmem:[#allocation5 + $0x208] sm:$0x3f]
    %v133 = vld [vmem:[#allocation5 + $0x210] sm:$0x3f]
    %v134 = vld [vmem:[#allocation5 + $0x218] sm:$0x3f]
    %v135 = vld [vmem:[#allocation5 + $0x220] sm:$0x3f]
    %v136 = vld [vmem:[#allocation5 + $0x228] sm:$0x3f]
    %v137 = vld [vmem:[#allocation5 + $0x230] sm:$0x3f]
    %v138 = vld [vmem:[#allocation5 + $0x238] sm:$0x3f]
    %v139 = vld [vmem:[#allocation5 + $0x240] sm:$0x3f]
    %v140 = vld [vmem:[#allocation5 + $0x248] sm:$0x3f]
    %v141 = vld [vmem:[#allocation5 + $0x250] sm:$0x3f]
    %v142 = vld [vmem:[#allocation5 + $0x258] sm:$0x3f]
    %v143 = vld [vmem:[#allocation5 + $0x260] sm:$0x3f]
    %v144 = vld [vmem:[#allocation5 + $0x268] sm:$0x3f]
    %v145 = vld [vmem:[#allocation5 + $0x270] sm:$0x3f]
    %v146 = vld [vmem:[#allocation5 + $0x278] sm:$0x3f]
    %v147 = vld [vmem:[#allocation5 + $0x280] sm:$0x3f]
    %v148 = vld [vmem:[#allocation5 + $0x288] sm:$0x3f]
    %v149 = vld [vmem:[#allocation5 + $0x290] sm:$0x3f]
    %v150 = vld [vmem:[#allocation5 + $0x298] sm:$0x3f]
    %v151 = vld [vmem:[#allocation5 + $0x2a0] sm:$0x3f]
    %v152 = vld [vmem:[#allocation5 + $0x2a8] sm:$0x3f]
    %v153 = vld [vmem:[#allocation5 + $0x2b0] sm:$0x3f]
    %v154 = vld [vmem:[#allocation5 + $0x2b8] sm:$0x3f]
    %v155 = vld [vmem:[#allocation5 + $0x2c0] sm:$0x3f]
    %v156 = vld [vmem:[#allocation5 + $0x2c8] sm:$0x3f]
    %v157 = vld [vmem:[#allocation5 + $0x2d0] sm:$0x3f]
    %v158 = vld [vmem:[#allocation5 + $0x2d8] sm:$0x3f]
    %v159 = vld [vmem:[#allocation5 + $0x2e0] sm:$0x3f]
    %v160 = vld [vmem:[#allocation5 + $0x2e8] sm:$0x3f]
    %v161 = vld [vmem:[#allocation5 + $0x2f0] sm:$0x3f]
    %v162 = vld [vmem:[#allocation5 + $0x2f8] sm:$0x3f]
    %v163 = vld [vmem:[%s2] sm:$0x1]
    %v165 = vperm.slane %v163, 0
    %191 = vst [vmem:[#allocation1] ss:$4 sm:$0xff] %v43
    %s192 = scalar_lea.vmem [#allocation1], 32
    %193 = vst [vmem:[%s192] ss:$4 sm:$0xff] %v44
    %v194 = vld.sshfl [vmem:[#allocation1] sm:$0xff pattern:$0x73625140]
    %v195 = vld.sshfl [vmem:[#allocation1 + $0x8] sm:$0xff pattern:$0x73625140]
    %v196 = vld.sshfl [vmem:[#allocation1 + $0x10] sm:$0xff pattern:$0x73625140]
    %v197 = vld.sshfl [vmem:[#allocation1 + $0x18] sm:$0xff pattern:$0x73625140]
    %v198 = vld.sshfl [vmem:[#allocation1 + $0x20] sm:$0xff pattern:$0x73625140]
    %v199 = vld.sshfl [vmem:[#allocation1 + $0x28] sm:$0xff pattern:$0x73625140]
    %v200 = vld.sshfl [vmem:[#allocation1 + $0x30] sm:$0xff pattern:$0x73625140]
    %v201 = vld.sshfl [vmem:[#allocation1 + $0x38] sm:$0xff pattern:$0x73625140]
    %202 = vst [vmem:[#allocation1] ss:$4 sm:$0xff] %v45
    %203 = vst [vmem:[%s192] ss:$4 sm:$0xff] %v46
    %v204 = vld.sshfl [vmem:[#allocation1] sm:$0xff pattern:$0x73625140]
    %v205 = vld.sshfl [vmem:[#allocation1 + $0x8] sm:$0xff pattern:$0x73625140]
    %v206 = vld.sshfl [vmem:[#allocation1 + $0x10] sm:$0xff pattern:$0x73625140]
    %v207 = vld.sshfl [vmem:[#allocation1 + $0x18] sm:$0xff pattern:$0x73625140]
    %v208 = vld.sshfl [vmem:[#allocation1 + $0x20] sm:$0xff pattern:$0x73625140]
    %v209 = vld.sshfl [vmem:[#allocation1 + $0x28] sm:$0xff pattern:$0x73625140]
    %v210 = vld.sshfl [vmem:[#allocation1 + $0x30] sm:$0xff pattern:$0x73625140]
    %v211 = vld.sshfl [vmem:[#allocation1 + $0x38] sm:$0xff pattern:$0x73625140]
    %212 = vst [vmem:[#allocation1] ss:$4 sm:$0xff] %v47
    %213 = vst [vmem:[%s192] ss:$4 sm:$0xff] %v48
    %v214 = vld.sshfl [vmem:[#allocation1] sm:$0xff pattern:$0x73625140]
    %v215 = vld.sshfl [vmem:[#allocation1 + $0x8] sm:$0xff pattern:$0x73625140]
    %v216 = vld.sshfl [vmem:[#allocation1 + $0x10] sm:$0xff pattern:$0x73625140]
    %v217 = vld.sshfl [vmem:[#allocation1 + $0x18] sm:$0xff pattern:$0x73625140]
    %v218 = vld.sshfl [vmem:[#allocation1 + $0x20] sm:$0xff pattern:$0x73625140]
    %v219 = vld.sshfl [vmem:[#allocation1 + $0x28] sm:$0xff pattern:$0x73625140]
    %v220 = vld.sshfl [vmem:[#allocation1 + $0x30] sm:$0xff pattern:$0x73625140]
    %v221 = vld.sshfl [vmem:[#allocation1 + $0x38] sm:$0xff pattern:$0x73625140]
    %222 = vst [vmem:[#allocation1] ss:$4 sm:$0xff] %v49
    %223 = vst [vmem:[%s192] ss:$4 sm:$0xff] %v50
    %v224 = vld.sshfl [vmem:[#allocation1] sm:$0xff pattern:$0x73625140]
    %v225 = vld.sshfl [vmem:[#allocation1 + $0x8] sm:$0xff pattern:$0x73625140]
    %v226 = vld.sshfl [vmem:[#allocation1 + $0x10] sm:$0xff pattern:$0x73625140]
    %v227 = vld.sshfl [vmem:[#allocation1 + $0x18] sm:$0xff pattern:$0x73625140]
    %v228 = vld.sshfl [vmem:[#allocation1 + $0x20] sm:$0xff pattern:$0x73625140]
    %v229 = vld.sshfl [vmem:[#allocation1 + $0x28] sm:$0xff pattern:$0x73625140]
    %v230 = vld.sshfl [vmem:[#allocation1 + $0x30] sm:$0xff pattern:$0x73625140]
    %v231 = vld.sshfl [vmem:[#allocation1 + $0x38] sm:$0xff pattern:$0x73625140]
    %232 = vst [vmem:[#allocation1] ss:$4 sm:$0xff] %v51
    %233 = vst [vmem:[%s192] ss:$4 sm:$0xff] %v52
    %v234 = vld.sshfl [vmem:[#allocation1] sm:$0xff pattern:$0x73625140]
    %v235 = vld.sshfl [vmem:[#allocation1 + $0x8] sm:$0xff pattern:$0x73625140]
    %v236 = vld.sshfl [vmem:[#allocation1 + $0x10] sm:$0xff pattern:$0x73625140]
    %v237 = vld.sshfl [vmem:[#allocation1 + $0x18] sm:$0xff pattern:$0x73625140]
    %v238 = vld.sshfl [vmem:[#allocation1 + $0x20] sm:$0xff pattern:$0x73625140]
    %v239 = vld.sshfl [vmem:[#allocation1 + $0x28] sm:$0xff pattern:$0x73625140]
    %v240 = vld.sshfl [vmem:[#allocation1 + $0x30] sm:$0xff pattern:$0x73625140]
    %v241 = vld.sshfl [vmem:[#allocation1 + $0x38] sm:$0xff pattern:$0x73625140]
    %242 = vst [vmem:[#allocation1] ss:$4 sm:$0xff] %v53
    %243 = vst [vmem:[%s192] ss:$4 sm:$0xff] %v54
    %v244 = vld.sshfl [vmem:[#allocation1] sm:$0xff pattern:$0x73625140]
    %v245 = vld.sshfl [vmem:[#allocation1 + $0x8] sm:$0xff pattern:$0x73625140]
    %v246 = vld.sshfl [vmem:[#allocation1 + $0x10] sm:$0xff pattern:$0x73625140]
    %v247 = vld.sshfl [vmem:[#allocation1 + $0x18] sm:$0xff pattern:$0x73625140]
    %v248 = vld.sshfl [vmem:[#allocation1 + $0x20] sm:$0xff pattern:$0x73625140]
    %v249 = vld.sshfl [vmem:[#allocation1 + $0x28] sm:$0xff pattern:$0x73625140]
    %v250 = vld.sshfl [vmem:[#allocation1 + $0x30] sm:$0xff pattern:$0x73625140]
    %v251 = vld.sshfl [vmem:[#allocation1 + $0x38] sm:$0xff pattern:$0x73625140]
    %252 = vst [vmem:[#allocation1] ss:$4 sm:$0xff] %v55
    %253 = vst [vmem:[%s192] ss:$4 sm:$0xff] %v56
    %v254 = vld.sshfl [vmem:[#allocation1] sm:$0xff pattern:$0x73625140]
    %v255 = vld.sshfl [vmem:[#allocation1 + $0x8] sm:$0xff pattern:$0x73625140]
    %v256 = vld.sshfl [vmem:[#allocation1 + $0x10] sm:$0xff pattern:$0x73625140]
    %v257 = vld.sshfl [vmem:[#allocation1 + $0x18] sm:$0xff pattern:$0x73625140]
    %v258 = vld.sshfl [vmem:[#allocation1 + $0x20] sm:$0xff pattern:$0x73625140]
    %v259 = vld.sshfl [vmem:[#allocation1 + $0x28] sm:$0xff pattern:$0x73625140]
    %v260 = vld.sshfl [vmem:[#allocation1 + $0x30] sm:$0xff pattern:$0x73625140]
    %v261 = vld.sshfl [vmem:[#allocation1 + $0x38] sm:$0xff pattern:$0x73625140]
    %262 = vst [vmem:[#allocation1] ss:$4 sm:$0xff] %v57
    %263 = vst [vmem:[%s192] ss:$4 sm:$0xff] %v58
    %v264 = vld.sshfl [vmem:[#allocation1] sm:$0xff pattern:$0x73625140]
    %v265 = vld.sshfl [vmem:[#allocation1 + $0x8] sm:$0xff pattern:$0x73625140]
    %v266 = vld.sshfl [vmem:[#allocation1 + $0x10] sm:$0xff pattern:$0x73625140]
    %v267 = vld.sshfl [vmem:[#allocation1 + $0x18] sm:$0xff pattern:$0x73625140]
    %v268 = vld.sshfl [vmem:[#allocation1 + $0x20] sm:$0xff pattern:$0x73625140]
    %v269 = vld.sshfl [vmem:[#allocation1 + $0x28] sm:$0xff pattern:$0x73625140]
    %v270 = vld.sshfl [vmem:[#allocation1 + $0x30] sm:$0xff pattern:$0x73625140]
    %v271 = vld.sshfl [vmem:[#allocation1 + $0x38] sm:$0xff pattern:$0x73625140]
    %272 = vst [vmem:[#allocation1] ss:$4 sm:$0xff] %v59
    %273 = vst [vmem:[%s192] ss:$4 sm:$0xff] %v60
    %v274 = vld.sshfl [vmem:[#allocation1] sm:$0xff pattern:$0x73625140]
    %v275 = vld.sshfl [vmem:[#allocation1 + $0x8] sm:$0xff pattern:$0x73625140]
    %v276 = vld.sshfl [vmem:[#allocation1 + $0x10] sm:$0xff pattern:$0x73625140]
    %v277 = vld.sshfl [vmem:[#allocation1 + $0x18] sm:$0xff pattern:$0x73625140]
    %v278 = vld.sshfl [vmem:[#allocation1 + $0x20] sm:$0xff pattern:$0x73625140]
    %v279 = vld.sshfl [vmem:[#allocation1 + $0x28] sm:$0xff pattern:$0x73625140]
    %v280 = vld.sshfl [vmem:[#allocation1 + $0x30] sm:$0xff pattern:$0x73625140]
    %v281 = vld.sshfl [vmem:[#allocation1 + $0x38] sm:$0xff pattern:$0x73625140]
    %282 = vst [vmem:[#allocation1] ss:$4 sm:$0xff] %v61
    %283 = vst [vmem:[%s192] ss:$4 sm:$0xff] %v62
    %v284 = vld.sshfl [vmem:[#allocation1] sm:$0xff pattern:$0x73625140]
    %v285 = vld.sshfl [vmem:[#allocation1 + $0x8] sm:$0xff pattern:$0x73625140]
    %v286 = vld.sshfl [vmem:[#allocation1 + $0x10] sm:$0xff pattern:$0x73625140]
    %v287 = vld.sshfl [vmem:[#allocation1 + $0x18] sm:$0xff pattern:$0x73625140]
    %v288 = vld.sshfl [vmem:[#allocation1 + $0x20] sm:$0xff pattern:$0x73625140]
    %v289 = vld.sshfl [vmem:[#allocation1 + $0x28] sm:$0xff pattern:$0x73625140]
    %v290 = vld.sshfl [vmem:[#allocation1 + $0x30] sm:$0xff pattern:$0x73625140]
    %v291 = vld.sshfl [vmem:[#allocation1 + $0x38] sm:$0xff pattern:$0x73625140]
    %292 = vst [vmem:[#allocation1] ss:$4 sm:$0xff] %v63
    %293 = vst [vmem:[%s192] ss:$4 sm:$0xff] %v64
    %v294 = vld.sshfl [vmem:[#allocation1] sm:$0xff pattern:$0x73625140]
    %v295 = vld.sshfl [vmem:[#allocation1 + $0x8] sm:$0xff pattern:$0x73625140]
    %v296 = vld.sshfl [vmem:[#allocation1 + $0x10] sm:$0xff pattern:$0x73625140]
    %v297 = vld.sshfl [vmem:[#allocation1 + $0x18] sm:$0xff pattern:$0x73625140]
    %v298 = vld.sshfl [vmem:[#allocation1 + $0x20] sm:$0xff pattern:$0x73625140]
    %v299 = vld.sshfl [vmem:[#allocation1 + $0x28] sm:$0xff pattern:$0x73625140]
    %v300 = vld.sshfl [vmem:[#allocation1 + $0x30] sm:$0xff pattern:$0x73625140]
    %v301 = vld.sshfl [vmem:[#allocation1 + $0x38] sm:$0xff pattern:$0x73625140]
    %302 = vst [vmem:[#allocation1] ss:$4 sm:$0xff] %v65
    %303 = vst [vmem:[%s192] ss:$4 sm:$0xff] %v66
    %v304 = vld.sshfl [vmem:[#allocation1] sm:$0xff pattern:$0x73625140]
    %v305 = vld.sshfl [vmem:[#allocation1 + $0x8] sm:$0xff pattern:$0x73625140]
    %v306 = vld.sshfl [vmem:[#allocation1 + $0x10] sm:$0xff pattern:$0x73625140]
    %v307 = vld.sshfl [vmem:[#allocation1 + $0x18] sm:$0xff pattern:$0x73625140]
    %v308 = vld.sshfl [vmem:[#allocation1 + $0x20] sm:$0xff pattern:$0x73625140]
    %v309 = vld.sshfl [vmem:[#allocation1 + $0x28] sm:$0xff pattern:$0x73625140]
    %v310 = vld.sshfl [vmem:[#allocation1 + $0x30] sm:$0xff pattern:$0x73625140]
    %v311 = vld.sshfl [vmem:[#allocation1 + $0x38] sm:$0xff pattern:$0x73625140]
    %408 = vmatpush.xpose.msra.mxu0 0.0
    %409 = vmatpush.xpose.msra.mxu0 0.0
    %410 = vmatpush.xpose.msra.mxu0 0.0
    %411 = vmatpush.xpose.msra.mxu0 0.0
    %412 = vmatpush.xpose.msra.mxu0 0.0
    %413 = vmatpush.xpose.msra.mxu0 0.0
    %414 = vmatpush.xpose.msra.mxu0 0.0
    %415 = vmatpush.xpose.msra.mxu0 0.0
    %416 = vmatpush.xpose.msra.mxu0 0.0
    %417 = vmatpush.xpose.msra.mxu0 0.0
    %418 = vmatpush.xpose.msra.mxu0 0.0
    %419 = vmatpush.xpose.msra.mxu0 0.0
    %420 = vmatpush.xpose.msra.mxu0 0.0
    %421 = vmatpush.xpose.msra.mxu0 0.0
    %422 = vmatpush.xpose.msra.mxu0 0.0
    %423 = vmatpush.xpose.msra.mxu0 %v67
    %424 = vmatmul.f32.gmra.mxu0 %v194
    %v425 = vpop.f32.mrf.mxu0
    %v426 = vadd.f32 %v165, %v425
    %427 = vdwg.mxu0
    %428 = vmatpush.xpose.msra.mxu0 0.0
    %429 = vmatpush.xpose.msra.mxu0 0.0
    %430 = vmatpush.xpose.msra.mxu0 0.0
    %431 = vmatpush.xpose.msra.mxu0 0.0
    %432 = vmatpush.xpose.msra.mxu0 0.0
    %433 = vmatpush.xpose.msra.mxu0 0.0
    %434 = vmatpush.xpose.msra.mxu0 0.0
    %435 = vmatpush.xpose.msra.mxu0 0.0
    %436 = vmatpush.xpose.msra.mxu0 0.0
    %437 = vmatpush.xpose.msra.mxu0 0.0
    %438 = vmatpush.xpose.msra.mxu0 0.0
    %439 = vmatpush.xpose.msra.mxu0 0.0
    %440 = vmatpush.xpose.msra.mxu0 0.0
    %441 = vmatpush.xpose.msra.mxu0 0.0
    %442 = vmatpush.xpose.msra.mxu0 0.0
    %443 = vmatpush.xpose.msra.mxu0 %v68
    %444 = vmatmul.f32.gmra.mxu0 %v195
    %v445 = vpop.f32.mrf.mxu0
    %v446 = vadd.f32 %v426, %v445
    %447 = vdwg.mxu0
    %448 = vmatpush.xpose.msra.mxu0 0.0
    %449 = vmatpush.xpose.msra.mxu0 0.0
    %450 = vmatpush.xpose.msra.mxu0 0.0
    %451 = vmatpush.xpose.msra.mxu0 0.0
    %452 = vmatpush.xpose.msra.mxu0 0.0
    %453 = vmatpush.xpose.msra.mxu0 0.0
    %454 = vmatpush.xpose.msra.mxu0 0.0
    %455 = vmatpush.xpose.msra.mxu0 0.0
    %456 = vmatpush.xpose.msra.mxu0 0.0
    %457 = vmatpush.xpose.msra.mxu0 0.0
    %458 = vmatpush.xpose.msra.mxu0 0.0
    %459 = vmatpush.xpose.msra.mxu0 0.0
    %460 = vmatpush.xpose.msra.mxu0 0.0
    %461 = vmatpush.xpose.msra.mxu0 0.0
    %462 = vmatpush.xpose.msra.mxu0 0.0
    %463 = vmatpush.xpose.msra.mxu0 %v69
    %464 = vmatmul.f32.gmra.mxu0 %v196
    %v465 = vpop.f32.mrf.mxu0
    %v466 = vadd.f32 %v446, %v465
    %467 = vdwg.mxu0
    %468 = vmatpush.xpose.msra.mxu0 0.0
    %469 = vmatpush.xpose.msra.mxu0 0.0
    %470 = vmatpush.xpose.msra.mxu0 0.0
    %471 = vmatpush.xpose.msra.mxu0 0.0
    %472 = vmatpush.xpose.msra.mxu0 0.0
    %473 = vmatpush.xpose.msra.mxu0 0.0
    %474 = vmatpush.xpose.msra.mxu0 0.0
    %475 = vmatpush.xpose.msra.mxu0 0.0
    %476 = vmatpush.xpose.msra.mxu0 0.0
    %477 = vmatpush.xpose.msra.mxu0 0.0
    %478 = vmatpush.xpose.msra.mxu0 0.0
    %479 = vmatpush.xpose.msra.mxu0 0.0
    %480 = vmatpush.xpose.msra.mxu0 0.0
    %481 = vmatpush.xpose.msra.mxu0 0.0
    %482 = vmatpush.xpose.msra.mxu0 0.0
    %483 = vmatpush.xpose.msra.mxu0 %v70
    %484 = vmatmul.f32.gmra.mxu0 %v197
    %v485 = vpop.f32.mrf.mxu0
    %v486 = vadd.f32 %v466, %v485
    %487 = vdwg.mxu0
    %488 = vmatpush.xpose.msra.mxu0 0.0
    %489 = vmatpush.xpose.msra.mxu0 0.0
    %490 = vmatpush.xpose.msra.mxu0 0.0
    %491 = vmatpush.xpose.msra.mxu0 0.0
    %492 = vmatpush.xpose.msra.mxu0 0.0
    %493 = vmatpush.xpose.msra.mxu0 0.0
    %494 = vmatpush.xpose.msra.mxu0 0.0
    %495 = vmatpush.xpose.msra.mxu0 0.0
    %496 = vmatpush.xpose.msra.mxu0 0.0
    %497 = vmatpush.xpose.msra.mxu0 0.0
    %498 = vmatpush.xpose.msra.mxu0 0.0
    %499 = vmatpush.xpose.msra.mxu0 0.0
    %500 = vmatpush.xpose.msra.mxu0 0.0
    %501 = vmatpush.xpose.msra.mxu0 0.0
    %502 = vmatpush.xpose.msra.mxu0 0.0
    %503 = vmatpush.xpose.msra.mxu0 %v71
    %504 = vmatmul.f32.gmra.mxu0 %v198
    %v505 = vpop.f32.mrf.mxu0
    %v506 = vadd.f32 %v486, %v505
    %507 = vdwg.mxu0
    %508 = vmatpush.xpose.msra.mxu0 0.0
    %509 = vmatpush.xpose.msra.mxu0 0.0
    %510 = vmatpush.xpose.msra.mxu0 0.0
    %511 = vmatpush.xpose.msra.mxu0 0.0
    %512 = vmatpush.xpose.msra.mxu0 0.0
    %513 = vmatpush.xpose.msra.mxu0 0.0
    %514 = vmatpush.xpose.msra.mxu0 0.0
    %515 = vmatpush.xpose.msra.mxu0 0.0
    %516 = vmatpush.xpose.msra.mxu0 0.0
    %517 = vmatpush.xpose.msra.mxu0 0.0
    %518 = vmatpush.xpose.msra.mxu0 0.0
    %519 = vmatpush.xpose.msra.mxu0 0.0
    %520 = vmatpush.xpose.msra.mxu0 0.0
    %521 = vmatpush.xpose.msra.mxu0 0.0
    %522 = vmatpush.xpose.msra.mxu0 0.0
    %523 = vmatpush.xpose.msra.mxu0 %v72
    %524 = vmatmul.f32.gmra.mxu0 %v199
    %v525 = vpop.f32.mrf.mxu0
    %v526 = vadd.f32 %v506, %v525
    %527 = vdwg.mxu0
    %528 = vmatpush.xpose.msra.mxu0 0.0
    %529 = vmatpush.xpose.msra.mxu0 0.0
    %530 = vmatpush.xpose.msra.mxu0 0.0
    %531 = vmatpush.xpose.msra.mxu0 0.0
    %532 = vmatpush.xpose.msra.mxu0 0.0
    %533 = vmatpush.xpose.msra.mxu0 0.0
    %534 = vmatpush.xpose.msra.mxu0 0.0
    %535 = vmatpush.xpose.msra.mxu0 0.0
    %536 = vmatpush.xpose.msra.mxu0 0.0
    %537 = vmatpush.xpose.msra.mxu0 0.0
    %538 = vmatpush.xpose.msra.mxu0 0.0
    %539 = vmatpush.xpose.msra.mxu0 0.0
    %540 = vmatpush.xpose.msra.mxu0 0.0
    %541 = vmatpush.xpose.msra.mxu0 0.0
    %542 = vmatpush.xpose.msra.mxu0 0.0
    %543 = vmatpush.xpose.msra.mxu0 %v73
    %544 = vmatmul.f32.gmra.mxu0 %v200
    %v545 = vpop.f32.mrf.mxu0
    %v546 = vadd.f32 %v526, %v545
    %547 = vdwg.mxu0
    %548 = vmatpush.xpose.msra.mxu0 0.0
    %549 = vmatpush.xpose.msra.mxu0 0.0
    %550 = vmatpush.xpose.msra.mxu0 0.0
    %551 = vmatpush.xpose.msra.mxu0 0.0
    %552 = vmatpush.xpose.msra.mxu0 0.0
    %553 = vmatpush.xpose.msra.mxu0 0.0
    %554 = vmatpush.xpose.msra.mxu0 0.0
    %555 = vmatpush.xpose.msra.mxu0 0.0
    %556 = vmatpush.xpose.msra.mxu0 0.0
    %557 = vmatpush.xpose.msra.mxu0 0.0
    %558 = vmatpush.xpose.msra.mxu0 0.0
    %559 = vmatpush.xpose.msra.mxu0 0.0
    %560 = vmatpush.xpose.msra.mxu0 0.0
    %561 = vmatpush.xpose.msra.mxu0 0.0
    %562 = vmatpush.xpose.msra.mxu0 0.0
    %563 = vmatpush.xpose.msra.mxu0 %v74
    %564 = vmatmul.f32.gmra.mxu0 %v201
    %v565 = vpop.f32.mrf.mxu0
    %v566 = vadd.f32 %v546, %v565
    %567 = vdwg.mxu0
    %568 = vmatpush.xpose.msra.mxu0 0.0
    %569 = vmatpush.xpose.msra.mxu0 0.0
    %570 = vmatpush.xpose.msra.mxu0 0.0
    %571 = vmatpush.xpose.msra.mxu0 0.0
    %572 = vmatpush.xpose.msra.mxu0 0.0
    %573 = vmatpush.xpose.msra.mxu0 0.0
    %574 = vmatpush.xpose.msra.mxu0 0.0
    %575 = vmatpush.xpose.msra.mxu0 0.0
    %576 = vmatpush.xpose.msra.mxu0 0.0
    %577 = vmatpush.xpose.msra.mxu0 0.0
    %578 = vmatpush.xpose.msra.mxu0 0.0
    %579 = vmatpush.xpose.msra.mxu0 0.0
    %580 = vmatpush.xpose.msra.mxu0 0.0
    %581 = vmatpush.xpose.msra.mxu0 0.0
    %582 = vmatpush.xpose.msra.mxu0 0.0
    %583 = vmatpush.xpose.msra.mxu0 %v75
    %584 = vmatmul.f32.gmra.mxu0 %v204
    %v585 = vpop.f32.mrf.mxu0
    %v586 = vadd.f32 %v566, %v585
    %587 = vdwg.mxu0
    %588 = vmatpush.xpose.msra.mxu0 0.0
    %589 = vmatpush.xpose.msra.mxu0 0.0
    %590 = vmatpush.xpose.msra.mxu0 0.0
    %591 = vmatpush.xpose.msra.mxu0 0.0
    %592 = vmatpush.xpose.msra.mxu0 0.0
    %593 = vmatpush.xpose.msra.mxu0 0.0
    %594 = vmatpush.xpose.msra.mxu0 0.0
    %595 = vmatpush.xpose.msra.mxu0 0.0
    %596 = vmatpush.xpose.msra.mxu0 0.0
    %597 = vmatpush.xpose.msra.mxu0 0.0
    %598 = vmatpush.xpose.msra.mxu0 0.0
    %599 = vmatpush.xpose.msra.mxu0 0.0
    %600 = vmatpush.xpose.msra.mxu0 0.0
    %601 = vmatpush.xpose.msra.mxu0 0.0
    %602 = vmatpush.xpose.msra.mxu0 0.0
    %603 = vmatpush.xpose.msra.mxu0 %v76
    %604 = vmatmul.f32.gmra.mxu0 %v205
    %v605 = vpop.f32.mrf.mxu0
    %v606 = vadd.f32 %v586, %v605
    %607 = vdwg.mxu0
    %608 = vmatpush.xpose.msra.mxu0 0.0
    %609 = vmatpush.xpose.msra.mxu0 0.0
    %610 = vmatpush.xpose.msra.mxu0 0.0
    %611 = vmatpush.xpose.msra.mxu0 0.0
    %612 = vmatpush.xpose.msra.mxu0 0.0
    %613 = vmatpush.xpose.msra.mxu0 0.0
    %614 = vmatpush.xpose.msra.mxu0 0.0
    %615 = vmatpush.xpose.msra.mxu0 0.0
    %616 = vmatpush.xpose.msra.mxu0 0.0
    %617 = vmatpush.xpose.msra.mxu0 0.0
    %618 = vmatpush.xpose.msra.mxu0 0.0
    %619 = vmatpush.xpose.msra.mxu0 0.0
    %620 = vmatpush.xpose.msra.mxu0 0.0
    %621 = vmatpush.xpose.msra.mxu0 0.0
    %622 = vmatpush.xpose.msra.mxu0 0.0
    %623 = vmatpush.xpose.msra.mxu0 %v77
    %624 = vmatmul.f32.gmra.mxu0 %v206
    %v625 = vpop.f32.mrf.mxu0
    %v626 = vadd.f32 %v606, %v625
    %627 = vdwg.mxu0
    %628 = vmatpush.xpose.msra.mxu0 0.0
    %629 = vmatpush.xpose.msra.mxu0 0.0
    %630 = vmatpush.xpose.msra.mxu0 0.0
    %631 = vmatpush.xpose.msra.mxu0 0.0
    %632 = vmatpush.xpose.msra.mxu0 0.0
    %633 = vmatpush.xpose.msra.mxu0 0.0
    %634 = vmatpush.xpose.msra.mxu0 0.0
    %635 = vmatpush.xpose.msra.mxu0 0.0
    %636 = vmatpush.xpose.msra.mxu0 0.0
    %637 = vmatpush.xpose.msra.mxu0 0.0
    %638 = vmatpush.xpose.msra.mxu0 0.0
    %639 = vmatpush.xpose.msra.mxu0 0.0
    %640 = vmatpush.xpose.msra.mxu0 0.0
    %641 = vmatpush.xpose.msra.mxu0 0.0
    %642 = vmatpush.xpose.msra.mxu0 0.0
    %643 = vmatpush.xpose.msra.mxu0 %v78
    %644 = vmatmul.f32.gmra.mxu0 %v207
    %v645 = vpop.f32.mrf.mxu0
    %v646 = vadd.f32 %v626, %v645
    %647 = vdwg.mxu0
    %648 = vmatpush.xpose.msra.mxu0 0.0
    %649 = vmatpush.xpose.msra.mxu0 0.0
    %650 = vmatpush.xpose.msra.mxu0 0.0
    %651 = vmatpush.xpose.msra.mxu0 0.0
    %652 = vmatpush.xpose.msra.mxu0 0.0
    %653 = vmatpush.xpose.msra.mxu0 0.0
    %654 = vmatpush.xpose.msra.mxu0 0.0
    %655 = vmatpush.xpose.msra.mxu0 0.0
    %656 = vmatpush.xpose.msra.mxu0 0.0
    %657 = vmatpush.xpose.msra.mxu0 0.0
    %658 = vmatpush.xpose.msra.mxu0 0.0
    %659 = vmatpush.xpose.msra.mxu0 0.0
    %660 = vmatpush.xpose.msra.mxu0 0.0
    %661 = vmatpush.xpose.msra.mxu0 0.0
    %662 = vmatpush.xpose.msra.mxu0 0.0
    %663 = vmatpush.xpose.msra.mxu0 %v79
    %664 = vmatmul.f32.gmra.mxu0 %v208
    %v665 = vpop.f32.mrf.mxu0
    %v666 = vadd.f32 %v646, %v665
    %667 = vdwg.mxu0
    %668 = vmatpush.xpose.msra.mxu0 0.0
    %669 = vmatpush.xpose.msra.mxu0 0.0
    %670 = vmatpush.xpose.msra.mxu0 0.0
    %671 = vmatpush.xpose.msra.mxu0 0.0
    %672 = vmatpush.xpose.msra.mxu0 0.0
    %673 = vmatpush.xpose.msra.mxu0 0.0
    %674 = vmatpush.xpose.msra.mxu0 0.0
    %675 = vmatpush.xpose.msra.mxu0 0.0
    %676 = vmatpush.xpose.msra.mxu0 0.0
    %677 = vmatpush.xpose.msra.mxu0 0.0
    %678 = vmatpush.xpose.msra.mxu0 0.0
    %679 = vmatpush.xpose.msra.mxu0 0.0
    %680 = vmatpush.xpose.msra.mxu0 0.0
    %681 = vmatpush.xpose.msra.mxu0 0.0
    %682 = vmatpush.xpose.msra.mxu0 0.0
    %683 = vmatpush.xpose.msra.mxu0 %v80
    %684 = vmatmul.f32.gmra.mxu0 %v209
    %v685 = vpop.f32.mrf.mxu0
    %v686 = vadd.f32 %v666, %v685
    %687 = vdwg.mxu0
    %688 = vmatpush.xpose.msra.mxu0 0.0
    %689 = vmatpush.xpose.msra.mxu0 0.0
    %690 = vmatpush.xpose.msra.mxu0 0.0
    %691 = vmatpush.xpose.msra.mxu0 0.0
    %692 = vmatpush.xpose.msra.mxu0 0.0
    %693 = vmatpush.xpose.msra.mxu0 0.0
    %694 = vmatpush.xpose.msra.mxu0 0.0
    %695 = vmatpush.xpose.msra.mxu0 0.0
    %696 = vmatpush.xpose.msra.mxu0 0.0
    %697 = vmatpush.xpose.msra.mxu0 0.0
    %698 = vmatpush.xpose.msra.mxu0 0.0
    %699 = vmatpush.xpose.msra.mxu0 0.0
    %700 = vmatpush.xpose.msra.mxu0 0.0
    %701 = vmatpush.xpose.msra.mxu0 0.0
    %702 = vmatpush.xpose.msra.mxu0 0.0
    %703 = vmatpush.xpose.msra.mxu0 %v81
    %704 = vmatmul.f32.gmra.mxu0 %v210
    %v705 = vpop.f32.mrf.mxu0
    %v706 = vadd.f32 %v686, %v705
    %707 = vdwg.mxu0
    %708 = vmatpush.xpose.msra.mxu0 0.0
    %709 = vmatpush.xpose.msra.mxu0 0.0
    %710 = vmatpush.xpose.msra.mxu0 0.0
    %711 = vmatpush.xpose.msra.mxu0 0.0
    %712 = vmatpush.xpose.msra.mxu0 0.0
    %713 = vmatpush.xpose.msra.mxu0 0.0
    %714 = vmatpush.xpose.msra.mxu0 0.0
    %715 = vmatpush.xpose.msra.mxu0 0.0
    %716 = vmatpush.xpose.msra.mxu0 0.0
    %717 = vmatpush.xpose.msra.mxu0 0.0
    %718 = vmatpush.xpose.msra.mxu0 0.0
    %719 = vmatpush.xpose.msra.mxu0 0.0
    %720 = vmatpush.xpose.msra.mxu0 0.0
    %721 = vmatpush.xpose.msra.mxu0 0.0
    %722 = vmatpush.xpose.msra.mxu0 0.0
    %723 = vmatpush.xpose.msra.mxu0 %v82
    %724 = vmatmul.f32.gmra.mxu0 %v211
    %v725 = vpop.f32.mrf.mxu0
    %v726 = vadd.f32 %v706, %v725
    %727 = vdwg.mxu0
    %728 = vmatpush.xpose.msra.mxu0 0.0
    %729 = vmatpush.xpose.msra.mxu0 0.0
    %730 = vmatpush.xpose.msra.mxu0 0.0
    %731 = vmatpush.xpose.msra.mxu0 0.0
    %732 = vmatpush.xpose.msra.mxu0 0.0
    %733 = vmatpush.xpose.msra.mxu0 0.0
    %734 = vmatpush.xpose.msra.mxu0 0.0
    %735 = vmatpush.xpose.msra.mxu0 0.0
    %736 = vmatpush.xpose.msra.mxu0 0.0
    %737 = vmatpush.xpose.msra.mxu0 0.0
    %738 = vmatpush.xpose.msra.mxu0 0.0
    %739 = vmatpush.xpose.msra.mxu0 0.0
    %740 = vmatpush.xpose.msra.mxu0 0.0
    %741 = vmatpush.xpose.msra.mxu0 0.0
    %742 = vmatpush.xpose.msra.mxu0 0.0
    %743 = vmatpush.xpose.msra.mxu0 %v83
    %744 = vmatmul.f32.gmra.mxu0 %v214
    %v745 = vpop.f32.mrf.mxu0
    %v746 = vadd.f32 %v726, %v745
    %747 = vdwg.mxu0
    %748 = vmatpush.xpose.msra.mxu0 0.0
    %749 = vmatpush.xpose.msra.mxu0 0.0
    %750 = vmatpush.xpose.msra.mxu0 0.0
    %751 = vmatpush.xpose.msra.mxu0 0.0
    %752 = vmatpush.xpose.msra.mxu0 0.0
    %753 = vmatpush.xpose.msra.mxu0 0.0
    %754 = vmatpush.xpose.msra.mxu0 0.0
    %755 = vmatpush.xpose.msra.mxu0 0.0
    %756 = vmatpush.xpose.msra.mxu0 0.0
    %757 = vmatpush.xpose.msra.mxu0 0.0
    %758 = vmatpush.xpose.msra.mxu0 0.0
    %759 = vmatpush.xpose.msra.mxu0 0.0
    %760 = vmatpush.xpose.msra.mxu0 0.0
    %761 = vmatpush.xpose.msra.mxu0 0.0
    %762 = vmatpush.xpose.msra.mxu0 0.0
    %763 = vmatpush.xpose.msra.mxu0 %v84
    %764 = vmatmul.f32.gmra.mxu0 %v215
    %v765 = vpop.f32.mrf.mxu0
    %v766 = vadd.f32 %v746, %v765
    %767 = vdwg.mxu0
    %768 = vmatpush.xpose.msra.mxu0 0.0
    %769 = vmatpush.xpose.msra.mxu0 0.0
    %770 = vmatpush.xpose.msra.mxu0 0.0
    %771 = vmatpush.xpose.msra.mxu0 0.0
    %772 = vmatpush.xpose.msra.mxu0 0.0
    %773 = vmatpush.xpose.msra.mxu0 0.0
    %774 = vmatpush.xpose.msra.mxu0 0.0
    %775 = vmatpush.xpose.msra.mxu0 0.0
    %776 = vmatpush.xpose.msra.mxu0 0.0
    %777 = vmatpush.xpose.msra.mxu0 0.0
    %778 = vmatpush.xpose.msra.mxu0 0.0
    %779 = vmatpush.xpose.msra.mxu0 0.0
    %780 = vmatpush.xpose.msra.mxu0 0.0
    %781 = vmatpush.xpose.msra.mxu0 0.0
    %782 = vmatpush.xpose.msra.mxu0 0.0
    %783 = vmatpush.xpose.msra.mxu0 %v85
    %784 = vmatmul.f32.gmra.mxu0 %v216
    %v785 = vpop.f32.mrf.mxu0
    %v786 = vadd.f32 %v766, %v785
    %787 = vdwg.mxu0
    %788 = vmatpush.xpose.msra.mxu0 0.0
    %789 = vmatpush.xpose.msra.mxu0 0.0
    %790 = vmatpush.xpose.msra.mxu0 0.0
    %791 = vmatpush.xpose.msra.mxu0 0.0
    %792 = vmatpush.xpose.msra.mxu0 0.0
    %793 = vmatpush.xpose.msra.mxu0 0.0
    %794 = vmatpush.xpose.msra.mxu0 0.0
    %795 = vmatpush.xpose.msra.mxu0 0.0
    %796 = vmatpush.xpose.msra.mxu0 0.0
    %797 = vmatpush.xpose.msra.mxu0 0.0
    %798 = vmatpush.xpose.msra.mxu0 0.0
    %799 = vmatpush.xpose.msra.mxu0 0.0
    %800 = vmatpush.xpose.msra.mxu0 0.0
    %801 = vmatpush.xpose.msra.mxu0 0.0
    %802 = vmatpush.xpose.msra.mxu0 0.0
    %803 = vmatpush.xpose.msra.mxu0 %v86
    %804 = vmatmul.f32.gmra.mxu0 %v217
    %v805 = vpop.f32.mrf.mxu0
    %v806 = vadd.f32 %v786, %v805
    %807 = vdwg.mxu0
    %808 = vmatpush.xpose.msra.mxu0 0.0
    %809 = vmatpush.xpose.msra.mxu0 0.0
    %810 = vmatpush.xpose.msra.mxu0 0.0
    %811 = vmatpush.xpose.msra.mxu0 0.0
    %812 = vmatpush.xpose.msra.mxu0 0.0
    %813 = vmatpush.xpose.msra.mxu0 0.0
    %814 = vmatpush.xpose.msra.mxu0 0.0
    %815 = vmatpush.xpose.msra.mxu0 0.0
    %816 = vmatpush.xpose.msra.mxu0 0.0
    %817 = vmatpush.xpose.msra.mxu0 0.0
    %818 = vmatpush.xpose.msra.mxu0 0.0
    %819 = vmatpush.xpose.msra.mxu0 0.0
    %820 = vmatpush.xpose.msra.mxu0 0.0
    %821 = vmatpush.xpose.msra.mxu0 0.0
    %822 = vmatpush.xpose.msra.mxu0 0.0
    %823 = vmatpush.xpose.msra.mxu0 %v87
    %824 = vmatmul.f32.gmra.mxu0 %v218
    %v825 = vpop.f32.mrf.mxu0
    %v826 = vadd.f32 %v806, %v825
    %827 = vdwg.mxu0
    %828 = vmatpush.xpose.msra.mxu0 0.0
    %829 = vmatpush.xpose.msra.mxu0 0.0
    %830 = vmatpush.xpose.msra.mxu0 0.0
    %831 = vmatpush.xpose.msra.mxu0 0.0
    %832 = vmatpush.xpose.msra.mxu0 0.0
    %833 = vmatpush.xpose.msra.mxu0 0.0
    %834 = vmatpush.xpose.msra.mxu0 0.0
    %835 = vmatpush.xpose.msra.mxu0 0.0
    %836 = vmatpush.xpose.msra.mxu0 0.0
    %837 = vmatpush.xpose.msra.mxu0 0.0
    %838 = vmatpush.xpose.msra.mxu0 0.0
    %839 = vmatpush.xpose.msra.mxu0 0.0
    %840 = vmatpush.xpose.msra.mxu0 0.0
    %841 = vmatpush.xpose.msra.mxu0 0.0
    %842 = vmatpush.xpose.msra.mxu0 0.0
    %843 = vmatpush.xpose.msra.mxu0 %v88
    %844 = vmatmul.f32.gmra.mxu0 %v219
    %v845 = vpop.f32.mrf.mxu0
    %v846 = vadd.f32 %v826, %v845
    %847 = vdwg.mxu0
    %848 = vmatpush.xpose.msra.mxu0 0.0
    %849 = vmatpush.xpose.msra.mxu0 0.0
    %850 = vmatpush.xpose.msra.mxu0 0.0
    %851 = vmatpush.xpose.msra.mxu0 0.0
    %852 = vmatpush.xpose.msra.mxu0 0.0
    %853 = vmatpush.xpose.msra.mxu0 0.0
    %854 = vmatpush.xpose.msra.mxu0 0.0
    %855 = vmatpush.xpose.msra.mxu0 0.0
    %856 = vmatpush.xpose.msra.mxu0 0.0
    %857 = vmatpush.xpose.msra.mxu0 0.0
    %858 = vmatpush.xpose.msra.mxu0 0.0
    %859 = vmatpush.xpose.msra.mxu0 0.0
    %860 = vmatpush.xpose.msra.mxu0 0.0
    %861 = vmatpush.xpose.msra.mxu0 0.0
    %862 = vmatpush.xpose.msra.mxu0 0.0
    %863 = vmatpush.xpose.msra.mxu0 %v89
    %864 = vmatmul.f32.gmra.mxu0 %v220
    %v865 = vpop.f32.mrf.mxu0
    %v866 = vadd.f32 %v846, %v865
    %867 = vdwg.mxu0
    %868 = vmatpush.xpose.msra.mxu0 0.0
    %869 = vmatpush.xpose.msra.mxu0 0.0
    %870 = vmatpush.xpose.msra.mxu0 0.0
    %871 = vmatpush.xpose.msra.mxu0 0.0
    %872 = vmatpush.xpose.msra.mxu0 0.0
    %873 = vmatpush.xpose.msra.mxu0 0.0
    %874 = vmatpush.xpose.msra.mxu0 0.0
    %875 = vmatpush.xpose.msra.mxu0 0.0
    %876 = vmatpush.xpose.msra.mxu0 0.0
    %877 = vmatpush.xpose.msra.mxu0 0.0
    %878 = vmatpush.xpose.msra.mxu0 0.0
    %879 = vmatpush.xpose.msra.mxu0 0.0
    %880 = vmatpush.xpose.msra.mxu0 0.0
    %881 = vmatpush.xpose.msra.mxu0 0.0
    %882 = vmatpush.xpose.msra.mxu0 0.0
    %883 = vmatpush.xpose.msra.mxu0 %v90
    %884 = vmatmul.f32.gmra.mxu0 %v221
    %v885 = vpop.f32.mrf.mxu0
    %v886 = vadd.f32 %v866, %v885
    %887 = vdwg.mxu0
    %888 = vmatpush.xpose.msra.mxu0 0.0
    %889 = vmatpush.xpose.msra.mxu0 0.0
    %890 = vmatpush.xpose.msra.mxu0 0.0
    %891 = vmatpush.xpose.msra.mxu0 0.0
    %892 = vmatpush.xpose.msra.mxu0 0.0
    %893 = vmatpush.xpose.msra.mxu0 0.0
    %894 = vmatpush.xpose.msra.mxu0 0.0
    %895 = vmatpush.xpose.msra.mxu0 0.0
    %896 = vmatpush.xpose.msra.mxu0 0.0
    %897 = vmatpush.xpose.msra.mxu0 0.0
    %898 = vmatpush.xpose.msra.mxu0 0.0
    %899 = vmatpush.xpose.msra.mxu0 0.0
    %900 = vmatpush.xpose.msra.mxu0 0.0
    %901 = vmatpush.xpose.msra.mxu0 0.0
    %902 = vmatpush.xpose.msra.mxu0 0.0
    %903 = vmatpush.xpose.msra.mxu0 %v91
    %904 = vmatmul.f32.gmra.mxu0 %v224
    %v905 = vpop.f32.mrf.mxu0
    %v906 = vadd.f32 %v886, %v905
    %907 = vdwg.mxu0
    %908 = vmatpush.xpose.msra.mxu0 0.0
    %909 = vmatpush.xpose.msra.mxu0 0.0
    %910 = vmatpush.xpose.msra.mxu0 0.0
    %911 = vmatpush.xpose.msra.mxu0 0.0
    %912 = vmatpush.xpose.msra.mxu0 0.0
    %913 = vmatpush.xpose.msra.mxu0 0.0
    %914 = vmatpush.xpose.msra.mxu0 0.0
    %915 = vmatpush.xpose.msra.mxu0 0.0
    %916 = vmatpush.xpose.msra.mxu0 0.0
    %917 = vmatpush.xpose.msra.mxu0 0.0
    %918 = vmatpush.xpose.msra.mxu0 0.0
    %919 = vmatpush.xpose.msra.mxu0 0.0
    %920 = vmatpush.xpose.msra.mxu0 0.0
    %921 = vmatpush.xpose.msra.mxu0 0.0
    %922 = vmatpush.xpose.msra.mxu0 0.0
    %923 = vmatpush.xpose.msra.mxu0 %v92
    %924 = vmatmul.f32.gmra.mxu0 %v225
    %v925 = vpop.f32.mrf.mxu0
    %v926 = vadd.f32 %v906, %v925
    %927 = vdwg.mxu0
    %928 = vmatpush.xpose.msra.mxu0 0.0
    %929 = vmatpush.xpose.msra.mxu0 0.0
    %930 = vmatpush.xpose.msra.mxu0 0.0
    %931 = vmatpush.xpose.msra.mxu0 0.0
    %932 = vmatpush.xpose.msra.mxu0 0.0
    %933 = vmatpush.xpose.msra.mxu0 0.0
    %934 = vmatpush.xpose.msra.mxu0 0.0
    %935 = vmatpush.xpose.msra.mxu0 0.0
    %936 = vmatpush.xpose.msra.mxu0 0.0
    %937 = vmatpush.xpose.msra.mxu0 0.0
    %938 = vmatpush.xpose.msra.mxu0 0.0
    %939 = vmatpush.xpose.msra.mxu0 0.0
    %940 = vmatpush.xpose.msra.mxu0 0.0
    %941 = vmatpush.xpose.msra.mxu0 0.0
    %942 = vmatpush.xpose.msra.mxu0 0.0
    %943 = vmatpush.xpose.msra.mxu0 %v93
    %944 = vmatmul.f32.gmra.mxu0 %v226
    %v945 = vpop.f32.mrf.mxu0
    %v946 = vadd.f32 %v926, %v945
    %947 = vdwg.mxu0
    %948 = vmatpush.xpose.msra.mxu0 0.0
    %949 = vmatpush.xpose.msra.mxu0 0.0
    %950 = vmatpush.xpose.msra.mxu0 0.0
    %951 = vmatpush.xpose.msra.mxu0 0.0
    %952 = vmatpush.xpose.msra.mxu0 0.0
    %953 = vmatpush.xpose.msra.mxu0 0.0
    %954 = vmatpush.xpose.msra.mxu0 0.0
    %955 = vmatpush.xpose.msra.mxu0 0.0
    %956 = vmatpush.xpose.msra.mxu0 0.0
    %957 = vmatpush.xpose.msra.mxu0 0.0
    %958 = vmatpush.xpose.msra.mxu0 0.0
    %959 = vmatpush.xpose.msra.mxu0 0.0
    %960 = vmatpush.xpose.msra.mxu0 0.0
    %961 = vmatpush.xpose.msra.mxu0 0.0
    %962 = vmatpush.xpose.msra.mxu0 0.0
    %963 = vmatpush.xpose.msra.mxu0 %v94
    %964 = vmatmul.f32.gmra.mxu0 %v227
    %v965 = vpop.f32.mrf.mxu0
    %v966 = vadd.f32 %v946, %v965
    %967 = vdwg.mxu0
    %968 = vmatpush.xpose.msra.mxu0 0.0
    %969 = vmatpush.xpose.msra.mxu0 0.0
    %970 = vmatpush.xpose.msra.mxu0 0.0
    %971 = vmatpush.xpose.msra.mxu0 0.0
    %972 = vmatpush.xpose.msra.mxu0 0.0
    %973 = vmatpush.xpose.msra.mxu0 0.0
    %974 = vmatpush.xpose.msra.mxu0 0.0
    %975 = vmatpush.xpose.msra.mxu0 0.0
    %976 = vmatpush.xpose.msra.mxu0 0.0
    %977 = vmatpush.xpose.msra.mxu0 0.0
    %978 = vmatpush.xpose.msra.mxu0 0.0
    %979 = vmatpush.xpose.msra.mxu0 0.0
    %980 = vmatpush.xpose.msra.mxu0 0.0
    %981 = vmatpush.xpose.msra.mxu0 0.0
    %982 = vmatpush.xpose.msra.mxu0 0.0
    %983 = vmatpush.xpose.msra.mxu0 %v95
    %984 = vmatmul.f32.gmra.mxu0 %v228
    %v985 = vpop.f32.mrf.mxu0
    %v986 = vadd.f32 %v966, %v985
    %987 = vdwg.mxu0
    %988 = vmatpush.xpose.msra.mxu0 0.0
    %989 = vmatpush.xpose.msra.mxu0 0.0
    %990 = vmatpush.xpose.msra.mxu0 0.0
    %991 = vmatpush.xpose.msra.mxu0 0.0
    %992 = vmatpush.xpose.msra.mxu0 0.0
    %993 = vmatpush.xpose.msra.mxu0 0.0
    %994 = vmatpush.xpose.msra.mxu0 0.0
    %995 = vmatpush.xpose.msra.mxu0 0.0
    %996 = vmatpush.xpose.msra.mxu0 0.0
    %997 = vmatpush.xpose.msra.mxu0 0.0
    %998 = vmatpush.xpose.msra.mxu0 0.0
    %999 = vmatpush.xpose.msra.mxu0 0.0
    %1000 = vmatpush.xpose.msra.mxu0 0.0
    %1001 = vmatpush.xpose.msra.mxu0 0.0
    %1002 = vmatpush.xpose.msra.mxu0 0.0
    %1003 = vmatpush.xpose.msra.mxu0 %v96
    %1004 = vmatmul.f32.gmra.mxu0 %v229
    %v1005 = vpop.f32.mrf.mxu0
    %v1006 = vadd.f32 %v986, %v1005
    %1007 = vdwg.mxu0
    %1008 = vmatpush.xpose.msra.mxu0 0.0
    %1009 = vmatpush.xpose.msra.mxu0 0.0
    %1010 = vmatpush.xpose.msra.mxu0 0.0
    %1011 = vmatpush.xpose.msra.mxu0 0.0
    %1012 = vmatpush.xpose.msra.mxu0 0.0
    %1013 = vmatpush.xpose.msra.mxu0 0.0
    %1014 = vmatpush.xpose.msra.mxu0 0.0
    %1015 = vmatpush.xpose.msra.mxu0 0.0
    %1016 = vmatpush.xpose.msra.mxu0 0.0
    %1017 = vmatpush.xpose.msra.mxu0 0.0
    %1018 = vmatpush.xpose.msra.mxu0 0.0
    %1019 = vmatpush.xpose.msra.mxu0 0.0
    %1020 = vmatpush.xpose.msra.mxu0 0.0
    %1021 = vmatpush.xpose.msra.mxu0 0.0
    %1022 = vmatpush.xpose.msra.mxu0 0.0
    %1023 = vmatpush.xpose.msra.mxu0 %v97
    %1024 = vmatmul.f32.gmra.mxu0 %v230
    %v1025 = vpop.f32.mrf.mxu0
    %v1026 = vadd.f32 %v1006, %v1025
    %1027 = vdwg.mxu0
    %1028 = vmatpush.xpose.msra.mxu0 0.0
    %1029 = vmatpush.xpose.msra.mxu0 0.0
    %1030 = vmatpush.xpose.msra.mxu0 0.0
    %1031 = vmatpush.xpose.msra.mxu0 0.0
    %1032 = vmatpush.xpose.msra.mxu0 0.0
    %1033 = vmatpush.xpose.msra.mxu0 0.0
    %1034 = vmatpush.xpose.msra.mxu0 0.0
    %1035 = vmatpush.xpose.msra.mxu0 0.0
    %1036 = vmatpush.xpose.msra.mxu0 0.0
    %1037 = vmatpush.xpose.msra.mxu0 0.0
    %1038 = vmatpush.xpose.msra.mxu0 0.0
    %1039 = vmatpush.xpose.msra.mxu0 0.0
    %1040 = vmatpush.xpose.msra.mxu0 0.0
    %1041 = vmatpush.xpose.msra.mxu0 0.0
    %1042 = vmatpush.xpose.msra.mxu0 0.0
    %1043 = vmatpush.xpose.msra.mxu0 %v98
    %1044 = vmatmul.f32.gmra.mxu0 %v231
    %v1045 = vpop.f32.mrf.mxu0
    %v1046 = vadd.f32 %v1026, %v1045
    %1047 = vdwg.mxu0
    %1048 = vmatpush.xpose.msra.mxu0 0.0
    %1049 = vmatpush.xpose.msra.mxu0 0.0
    %1050 = vmatpush.xpose.msra.mxu0 0.0
    %1051 = vmatpush.xpose.msra.mxu0 0.0
    %1052 = vmatpush.xpose.msra.mxu0 0.0
    %1053 = vmatpush.xpose.msra.mxu0 0.0
    %1054 = vmatpush.xpose.msra.mxu0 0.0
    %1055 = vmatpush.xpose.msra.mxu0 0.0
    %1056 = vmatpush.xpose.msra.mxu0 0.0
    %1057 = vmatpush.xpose.msra.mxu0 0.0
    %1058 = vmatpush.xpose.msra.mxu0 0.0
    %1059 = vmatpush.xpose.msra.mxu0 0.0
    %1060 = vmatpush.xpose.msra.mxu0 0.0
    %1061 = vmatpush.xpose.msra.mxu0 0.0
    %1062 = vmatpush.xpose.msra.mxu0 0.0
    %1063 = vmatpush.xpose.msra.mxu0 %v99
    %1064 = vmatmul.f32.gmra.mxu0 %v234
    %v1065 = vpop.f32.mrf.mxu0
    %v1066 = vadd.f32 %v1046, %v1065
    %1067 = vdwg.mxu0
    %1068 = vmatpush.xpose.msra.mxu0 0.0
    %1069 = vmatpush.xpose.msra.mxu0 0.0
    %1070 = vmatpush.xpose.msra.mxu0 0.0
    %1071 = vmatpush.xpose.msra.mxu0 0.0
    %1072 = vmatpush.xpose.msra.mxu0 0.0
    %1073 = vmatpush.xpose.msra.mxu0 0.0
    %1074 = vmatpush.xpose.msra.mxu0 0.0
    %1075 = vmatpush.xpose.msra.mxu0 0.0
    %1076 = vmatpush.xpose.msra.mxu0 0.0
    %1077 = vmatpush.xpose.msra.mxu0 0.0
    %1078 = vmatpush.xpose.msra.mxu0 0.0
    %1079 = vmatpush.xpose.msra.mxu0 0.0
    %1080 = vmatpush.xpose.msra.mxu0 0.0
    %1081 = vmatpush.xpose.msra.mxu0 0.0
    %1082 = vmatpush.xpose.msra.mxu0 0.0
    %1083 = vmatpush.xpose.msra.mxu0 %v100
    %1084 = vmatmul.f32.gmra.mxu0 %v235
    %v1085 = vpop.f32.mrf.mxu0
    %v1086 = vadd.f32 %v1066, %v1085
    %1087 = vdwg.mxu0
    %1088 = vmatpush.xpose.msra.mxu0 0.0
    %1089 = vmatpush.xpose.msra.mxu0 0.0
    %1090 = vmatpush.xpose.msra.mxu0 0.0
    %1091 = vmatpush.xpose.msra.mxu0 0.0
    %1092 = vmatpush.xpose.msra.mxu0 0.0
    %1093 = vmatpush.xpose.msra.mxu0 0.0
    %1094 = vmatpush.xpose.msra.mxu0 0.0
    %1095 = vmatpush.xpose.msra.mxu0 0.0
    %1096 = vmatpush.xpose.msra.mxu0 0.0
    %1097 = vmatpush.xpose.msra.mxu0 0.0
    %1098 = vmatpush.xpose.msra.mxu0 0.0
    %1099 = vmatpush.xpose.msra.mxu0 0.0
    %1100 = vmatpush.xpose.msra.mxu0 0.0
    %1101 = vmatpush.xpose.msra.mxu0 0.0
    %1102 = vmatpush.xpose.msra.mxu0 0.0
    %1103 = vmatpush.xpose.msra.mxu0 %v101
    %1104 = vmatmul.f32.gmra.mxu0 %v236
    %v1105 = vpop.f32.mrf.mxu0
    %v1106 = vadd.f32 %v1086, %v1105
    %1107 = vdwg.mxu0
    %1108 = vmatpush.xpose.msra.mxu0 0.0
    %1109 = vmatpush.xpose.msra.mxu0 0.0
    %1110 = vmatpush.xpose.msra.mxu0 0.0
    %1111 = vmatpush.xpose.msra.mxu0 0.0
    %1112 = vmatpush.xpose.msra.mxu0 0.0
    %1113 = vmatpush.xpose.msra.mxu0 0.0
    %1114 = vmatpush.xpose.msra.mxu0 0.0
    %1115 = vmatpush.xpose.msra.mxu0 0.0
    %1116 = vmatpush.xpose.msra.mxu0 0.0
    %1117 = vmatpush.xpose.msra.mxu0 0.0
    %1118 = vmatpush.xpose.msra.mxu0 0.0
    %1119 = vmatpush.xpose.msra.mxu0 0.0
    %1120 = vmatpush.xpose.msra.mxu0 0.0
    %1121 = vmatpush.xpose.msra.mxu0 0.0
    %1122 = vmatpush.xpose.msra.mxu0 0.0
    %1123 = vmatpush.xpose.msra.mxu0 %v102
    %1124 = vmatmul.f32.gmra.mxu0 %v237
    %v1125 = vpop.f32.mrf.mxu0
    %v1126 = vadd.f32 %v1106, %v1125
    %1127 = vdwg.mxu0
    %1128 = vmatpush.xpose.msra.mxu0 0.0
    %1129 = vmatpush.xpose.msra.mxu0 0.0
    %1130 = vmatpush.xpose.msra.mxu0 0.0
    %1131 = vmatpush.xpose.msra.mxu0 0.0
    %1132 = vmatpush.xpose.msra.mxu0 0.0
    %1133 = vmatpush.xpose.msra.mxu0 0.0
    %1134 = vmatpush.xpose.msra.mxu0 0.0
    %1135 = vmatpush.xpose.msra.mxu0 0.0
    %1136 = vmatpush.xpose.msra.mxu0 0.0
    %1137 = vmatpush.xpose.msra.mxu0 0.0
    %1138 = vmatpush.xpose.msra.mxu0 0.0
    %1139 = vmatpush.xpose.msra.mxu0 0.0
    %1140 = vmatpush.xpose.msra.mxu0 0.0
    %1141 = vmatpush.xpose.msra.mxu0 0.0
    %1142 = vmatpush.xpose.msra.mxu0 0.0
    %1143 = vmatpush.xpose.msra.mxu0 %v103
    %1144 = vmatmul.f32.gmra.mxu0 %v238
    %v1145 = vpop.f32.mrf.mxu0
    %v1146 = vadd.f32 %v1126, %v1145
    %1147 = vdwg.mxu0
    %1148 = vmatpush.xpose.msra.mxu0 0.0
    %1149 = vmatpush.xpose.msra.mxu0 0.0
    %1150 = vmatpush.xpose.msra.mxu0 0.0
    %1151 = vmatpush.xpose.msra.mxu0 0.0
    %1152 = vmatpush.xpose.msra.mxu0 0.0
    %1153 = vmatpush.xpose.msra.mxu0 0.0
    %1154 = vmatpush.xpose.msra.mxu0 0.0
    %1155 = vmatpush.xpose.msra.mxu0 0.0
    %1156 = vmatpush.xpose.msra.mxu0 0.0
    %1157 = vmatpush.xpose.msra.mxu0 0.0
    %1158 = vmatpush.xpose.msra.mxu0 0.0
    %1159 = vmatpush.xpose.msra.mxu0 0.0
    %1160 = vmatpush.xpose.msra.mxu0 0.0
    %1161 = vmatpush.xpose.msra.mxu0 0.0
    %1162 = vmatpush.xpose.msra.mxu0 0.0
    %1163 = vmatpush.xpose.msra.mxu0 %v104
    %1164 = vmatmul.f32.gmra.mxu0 %v239
    %v1165 = vpop.f32.mrf.mxu0
    %v1166 = vadd.f32 %v1146, %v1165
    %1167 = vdwg.mxu0
    %1168 = vmatpush.xpose.msra.mxu0 0.0
    %1169 = vmatpush.xpose.msra.mxu0 0.0
    %1170 = vmatpush.xpose.msra.mxu0 0.0
    %1171 = vmatpush.xpose.msra.mxu0 0.0
    %1172 = vmatpush.xpose.msra.mxu0 0.0
    %1173 = vmatpush.xpose.msra.mxu0 0.0
    %1174 = vmatpush.xpose.msra.mxu0 0.0
    %1175 = vmatpush.xpose.msra.mxu0 0.0
    %1176 = vmatpush.xpose.msra.mxu0 0.0
    %1177 = vmatpush.xpose.msra.mxu0 0.0
    %1178 = vmatpush.xpose.msra.mxu0 0.0
    %1179 = vmatpush.xpose.msra.mxu0 0.0
    %1180 = vmatpush.xpose.msra.mxu0 0.0
    %1181 = vmatpush.xpose.msra.mxu0 0.0
    %1182 = vmatpush.xpose.msra.mxu0 0.0
    %1183 = vmatpush.xpose.msra.mxu0 %v105
    %1184 = vmatmul.f32.gmra.mxu0 %v240
    %v1185 = vpop.f32.mrf.mxu0
    %v1186 = vadd.f32 %v1166, %v1185
    %1187 = vdwg.mxu0
    %1188 = vmatpush.xpose.msra.mxu0 0.0
    %1189 = vmatpush.xpose.msra.mxu0 0.0
    %1190 = vmatpush.xpose.msra.mxu0 0.0
    %1191 = vmatpush.xpose.msra.mxu0 0.0
    %1192 = vmatpush.xpose.msra.mxu0 0.0
    %1193 = vmatpush.xpose.msra.mxu0 0.0
    %1194 = vmatpush.xpose.msra.mxu0 0.0
    %1195 = vmatpush.xpose.msra.mxu0 0.0
    %1196 = vmatpush.xpose.msra.mxu0 0.0
    %1197 = vmatpush.xpose.msra.mxu0 0.0
    %1198 = vmatpush.xpose.msra.mxu0 0.0
    %1199 = vmatpush.xpose.msra.mxu0 0.0
    %1200 = vmatpush.xpose.msra.mxu0 0.0
    %1201 = vmatpush.xpose.msra.mxu0 0.0
    %1202 = vmatpush.xpose.msra.mxu0 0.0
    %1203 = vmatpush.xpose.msra.mxu0 %v106
    %1204 = vmatmul.f32.gmra.mxu0 %v241
    %v1205 = vpop.f32.mrf.mxu0
    %v1206 = vadd.f32 %v1186, %v1205
    %1207 = vdwg.mxu0
    %1208 = vmatpush.xpose.msra.mxu0 0.0
    %1209 = vmatpush.xpose.msra.mxu0 0.0
    %1210 = vmatpush.xpose.msra.mxu0 0.0
    %1211 = vmatpush.xpose.msra.mxu0 0.0
    %1212 = vmatpush.xpose.msra.mxu0 0.0
    %1213 = vmatpush.xpose.msra.mxu0 0.0
    %1214 = vmatpush.xpose.msra.mxu0 0.0
    %1215 = vmatpush.xpose.msra.mxu0 0.0
    %1216 = vmatpush.xpose.msra.mxu0 0.0
    %1217 = vmatpush.xpose.msra.mxu0 0.0
    %1218 = vmatpush.xpose.msra.mxu0 0.0
    %1219 = vmatpush.xpose.msra.mxu0 0.0
    %1220 = vmatpush.xpose.msra.mxu0 0.0
    %1221 = vmatpush.xpose.msra.mxu0 0.0
    %1222 = vmatpush.xpose.msra.mxu0 0.0
    %1223 = vmatpush.xpose.msra.mxu0 %v107
    %1224 = vmatmul.f32.gmra.mxu0 %v244
    %v1225 = vpop.f32.mrf.mxu0
    %v1226 = vadd.f32 %v1206, %v1225
    %1227 = vdwg.mxu0
    %1228 = vmatpush.xpose.msra.mxu0 0.0
    %1229 = vmatpush.xpose.msra.mxu0 0.0
    %1230 = vmatpush.xpose.msra.mxu0 0.0
    %1231 = vmatpush.xpose.msra.mxu0 0.0
    %1232 = vmatpush.xpose.msra.mxu0 0.0
    %1233 = vmatpush.xpose.msra.mxu0 0.0
    %1234 = vmatpush.xpose.msra.mxu0 0.0
    %1235 = vmatpush.xpose.msra.mxu0 0.0
    %1236 = vmatpush.xpose.msra.mxu0 0.0
    %1237 = vmatpush.xpose.msra.mxu0 0.0
    %1238 = vmatpush.xpose.msra.mxu0 0.0
    %1239 = vmatpush.xpose.msra.mxu0 0.0
    %1240 = vmatpush.xpose.msra.mxu0 0.0
    %1241 = vmatpush.xpose.msra.mxu0 0.0
    %1242 = vmatpush.xpose.msra.mxu0 0.0
    %1243 = vmatpush.xpose.msra.mxu0 %v108
    %1244 = vmatmul.f32.gmra.mxu0 %v245
    %v1245 = vpop.f32.mrf.mxu0
    %v1246 = vadd.f32 %v1226, %v1245
    %1247 = vdwg.mxu0
    %1248 = vmatpush.xpose.msra.mxu0 0.0
    %1249 = vmatpush.xpose.msra.mxu0 0.0
    %1250 = vmatpush.xpose.msra.mxu0 0.0
    %1251 = vmatpush.xpose.msra.mxu0 0.0
    %1252 = vmatpush.xpose.msra.mxu0 0.0
    %1253 = vmatpush.xpose.msra.mxu0 0.0
    %1254 = vmatpush.xpose.msra.mxu0 0.0
    %1255 = vmatpush.xpose.msra.mxu0 0.0
    %1256 = vmatpush.xpose.msra.mxu0 0.0
    %1257 = vmatpush.xpose.msra.mxu0 0.0
    %1258 = vmatpush.xpose.msra.mxu0 0.0
    %1259 = vmatpush.xpose.msra.mxu0 0.0
    %1260 = vmatpush.xpose.msra.mxu0 0.0
    %1261 = vmatpush.xpose.msra.mxu0 0.0
    %1262 = vmatpush.xpose.msra.mxu0 0.0
    %1263 = vmatpush.xpose.msra.mxu0 %v109
    %1264 = vmatmul.f32.gmra.mxu0 %v246
    %v1265 = vpop.f32.mrf.mxu0
    %v1266 = vadd.f32 %v1246, %v1265
    %1267 = vdwg.mxu0
    %1268 = vmatpush.xpose.msra.mxu0 0.0
    %1269 = vmatpush.xpose.msra.mxu0 0.0
    %1270 = vmatpush.xpose.msra.mxu0 0.0
    %1271 = vmatpush.xpose.msra.mxu0 0.0
    %1272 = vmatpush.xpose.msra.mxu0 0.0
    %1273 = vmatpush.xpose.msra.mxu0 0.0
    %1274 = vmatpush.xpose.msra.mxu0 0.0
    %1275 = vmatpush.xpose.msra.mxu0 0.0
    %1276 = vmatpush.xpose.msra.mxu0 0.0
    %1277 = vmatpush.xpose.msra.mxu0 0.0
    %1278 = vmatpush.xpose.msra.mxu0 0.0
    %1279 = vmatpush.xpose.msra.mxu0 0.0
    %1280 = vmatpush.xpose.msra.mxu0 0.0
    %1281 = vmatpush.xpose.msra.mxu0 0.0
    %1282 = vmatpush.xpose.msra.mxu0 0.0
    %1283 = vmatpush.xpose.msra.mxu0 %v110
    %1284 = vmatmul.f32.gmra.mxu0 %v247
    %v1285 = vpop.f32.mrf.mxu0
    %v1286 = vadd.f32 %v1266, %v1285
    %1287 = vdwg.mxu0
    %1288 = vmatpush.xpose.msra.mxu0 0.0
    %1289 = vmatpush.xpose.msra.mxu0 0.0
    %1290 = vmatpush.xpose.msra.mxu0 0.0
    %1291 = vmatpush.xpose.msra.mxu0 0.0
    %1292 = vmatpush.xpose.msra.mxu0 0.0
    %1293 = vmatpush.xpose.msra.mxu0 0.0
    %1294 = vmatpush.xpose.msra.mxu0 0.0
    %1295 = vmatpush.xpose.msra.mxu0 0.0
    %1296 = vmatpush.xpose.msra.mxu0 0.0
    %1297 = vmatpush.xpose.msra.mxu0 0.0
    %1298 = vmatpush.xpose.msra.mxu0 0.0
    %1299 = vmatpush.xpose.msra.mxu0 0.0
    %1300 = vmatpush.xpose.msra.mxu0 0.0
    %1301 = vmatpush.xpose.msra.mxu0 0.0
    %1302 = vmatpush.xpose.msra.mxu0 0.0
    %1303 = vmatpush.xpose.msra.mxu0 %v111
    %1304 = vmatmul.f32.gmra.mxu0 %v248
    %v1305 = vpop.f32.mrf.mxu0
    %v1306 = vadd.f32 %v1286, %v1305
    %1307 = vdwg.mxu0
    %1308 = vmatpush.xpose.msra.mxu0 0.0
    %1309 = vmatpush.xpose.msra.mxu0 0.0
    %1310 = vmatpush.xpose.msra.mxu0 0.0
    %1311 = vmatpush.xpose.msra.mxu0 0.0
    %1312 = vmatpush.xpose.msra.mxu0 0.0
    %1313 = vmatpush.xpose.msra.mxu0 0.0
    %1314 = vmatpush.xpose.msra.mxu0 0.0
    %1315 = vmatpush.xpose.msra.mxu0 0.0
    %1316 = vmatpush.xpose.msra.mxu0 0.0
    %1317 = vmatpush.xpose.msra.mxu0 0.0
    %1318 = vmatpush.xpose.msra.mxu0 0.0
    %1319 = vmatpush.xpose.msra.mxu0 0.0
    %1320 = vmatpush.xpose.msra.mxu0 0.0
    %1321 = vmatpush.xpose.msra.mxu0 0.0
    %1322 = vmatpush.xpose.msra.mxu0 0.0
    %1323 = vmatpush.xpose.msra.mxu0 %v112
    %1324 = vmatmul.f32.gmra.mxu0 %v249
    %v1325 = vpop.f32.mrf.mxu0
    %v1326 = vadd.f32 %v1306, %v1325
    %1327 = vdwg.mxu0
    %1328 = vmatpush.xpose.msra.mxu0 0.0
    %1329 = vmatpush.xpose.msra.mxu0 0.0
    %1330 = vmatpush.xpose.msra.mxu0 0.0
    %1331 = vmatpush.xpose.msra.mxu0 0.0
    %1332 = vmatpush.xpose.msra.mxu0 0.0
    %1333 = vmatpush.xpose.msra.mxu0 0.0
    %1334 = vmatpush.xpose.msra.mxu0 0.0
    %1335 = vmatpush.xpose.msra.mxu0 0.0
    %1336 = vmatpush.xpose.msra.mxu0 0.0
    %1337 = vmatpush.xpose.msra.mxu0 0.0
    %1338 = vmatpush.xpose.msra.mxu0 0.0
    %1339 = vmatpush.xpose.msra.mxu0 0.0
    %1340 = vmatpush.xpose.msra.mxu0 0.0
    %1341 = vmatpush.xpose.msra.mxu0 0.0
    %1342 = vmatpush.xpose.msra.mxu0 0.0
    %1343 = vmatpush.xpose.msra.mxu0 %v113
    %1344 = vmatmul.f32.gmra.mxu0 %v250
    %v1345 = vpop.f32.mrf.mxu0
    %v1346 = vadd.f32 %v1326, %v1345
    %1347 = vdwg.mxu0
    %1348 = vmatpush.xpose.msra.mxu0 0.0
    %1349 = vmatpush.xpose.msra.mxu0 0.0
    %1350 = vmatpush.xpose.msra.mxu0 0.0
    %1351 = vmatpush.xpose.msra.mxu0 0.0
    %1352 = vmatpush.xpose.msra.mxu0 0.0
    %1353 = vmatpush.xpose.msra.mxu0 0.0
    %1354 = vmatpush.xpose.msra.mxu0 0.0
    %1355 = vmatpush.xpose.msra.mxu0 0.0
    %1356 = vmatpush.xpose.msra.mxu0 0.0
    %1357 = vmatpush.xpose.msra.mxu0 0.0
    %1358 = vmatpush.xpose.msra.mxu0 0.0
    %1359 = vmatpush.xpose.msra.mxu0 0.0
    %1360 = vmatpush.xpose.msra.mxu0 0.0
    %1361 = vmatpush.xpose.msra.mxu0 0.0
    %1362 = vmatpush.xpose.msra.mxu0 0.0
    %1363 = vmatpush.xpose.msra.mxu0 %v114
    %1364 = vmatmul.f32.gmra.mxu0 %v251
    %v1365 = vpop.f32.mrf.mxu0
    %v1366 = vadd.f32 %v1346, %v1365
    %1367 = vdwg.mxu0
    %1368 = vmatpush.xpose.msra.mxu0 0.0
    %1369 = vmatpush.xpose.msra.mxu0 0.0
    %1370 = vmatpush.xpose.msra.mxu0 0.0
    %1371 = vmatpush.xpose.msra.mxu0 0.0
    %1372 = vmatpush.xpose.msra.mxu0 0.0
    %1373 = vmatpush.xpose.msra.mxu0 0.0
    %1374 = vmatpush.xpose.msra.mxu0 0.0
    %1375 = vmatpush.xpose.msra.mxu0 0.0
    %1376 = vmatpush.xpose.msra.mxu0 0.0
    %1377 = vmatpush.xpose.msra.mxu0 0.0
    %1378 = vmatpush.xpose.msra.mxu0 0.0
    %1379 = vmatpush.xpose.msra.mxu0 0.0
    %1380 = vmatpush.xpose.msra.mxu0 0.0
    %1381 = vmatpush.xpose.msra.mxu0 0.0
    %1382 = vmatpush.xpose.msra.mxu0 0.0
    %1383 = vmatpush.xpose.msra.mxu0 %v115
    %1384 = vmatmul.f32.gmra.mxu0 %v254
    %v1385 = vpop.f32.mrf.mxu0
    %v1386 = vadd.f32 %v1366, %v1385
    %1387 = vdwg.mxu0
    %1388 = vmatpush.xpose.msra.mxu0 0.0
    %1389 = vmatpush.xpose.msra.mxu0 0.0
    %1390 = vmatpush.xpose.msra.mxu0 0.0
    %1391 = vmatpush.xpose.msra.mxu0 0.0
    %1392 = vmatpush.xpose.msra.mxu0 0.0
    %1393 = vmatpush.xpose.msra.mxu0 0.0
    %1394 = vmatpush.xpose.msra.mxu0 0.0
    %1395 = vmatpush.xpose.msra.mxu0 0.0
    %1396 = vmatpush.xpose.msra.mxu0 0.0
    %1397 = vmatpush.xpose.msra.mxu0 0.0
    %1398 = vmatpush.xpose.msra.mxu0 0.0
    %1399 = vmatpush.xpose.msra.mxu0 0.0
    %1400 = vmatpush.xpose.msra.mxu0 0.0
    %1401 = vmatpush.xpose.msra.mxu0 0.0
    %1402 = vmatpush.xpose.msra.mxu0 0.0
    %1403 = vmatpush.xpose.msra.mxu0 %v116
    %1404 = vmatmul.f32.gmra.mxu0 %v255
    %v1405 = vpop.f32.mrf.mxu0
    %v1406 = vadd.f32 %v1386, %v1405
    %1407 = vdwg.mxu0
    %1408 = vmatpush.xpose.msra.mxu0 0.0
    %1409 = vmatpush.xpose.msra.mxu0 0.0
    %1410 = vmatpush.xpose.msra.mxu0 0.0
    %1411 = vmatpush.xpose.msra.mxu0 0.0
    %1412 = vmatpush.xpose.msra.mxu0 0.0
    %1413 = vmatpush.xpose.msra.mxu0 0.0
    %1414 = vmatpush.xpose.msra.mxu0 0.0
    %1415 = vmatpush.xpose.msra.mxu0 0.0
    %1416 = vmatpush.xpose.msra.mxu0 0.0
    %1417 = vmatpush.xpose.msra.mxu0 0.0
    %1418 = vmatpush.xpose.msra.mxu0 0.0
    %1419 = vmatpush.xpose.msra.mxu0 0.0
    %1420 = vmatpush.xpose.msra.mxu0 0.0
    %1421 = vmatpush.xpose.msra.mxu0 0.0
    %1422 = vmatpush.xpose.msra.mxu0 0.0
    %1423 = vmatpush.xpose.msra.mxu0 %v117
    %1424 = vmatmul.f32.gmra.mxu0 %v256
    %v1425 = vpop.f32.mrf.mxu0
    %v1426 = vadd.f32 %v1406, %v1425
    %1427 = vdwg.mxu0
    %1428 = vmatpush.xpose.msra.mxu0 0.0
    %1429 = vmatpush.xpose.msra.mxu0 0.0
    %1430 = vmatpush.xpose.msra.mxu0 0.0
    %1431 = vmatpush.xpose.msra.mxu0 0.0
    %1432 = vmatpush.xpose.msra.mxu0 0.0
    %1433 = vmatpush.xpose.msra.mxu0 0.0
    %1434 = vmatpush.xpose.msra.mxu0 0.0
    %1435 = vmatpush.xpose.msra.mxu0 0.0
    %1436 = vmatpush.xpose.msra.mxu0 0.0
    %1437 = vmatpush.xpose.msra.mxu0 0.0
    %1438 = vmatpush.xpose.msra.mxu0 0.0
    %1439 = vmatpush.xpose.msra.mxu0 0.0
    %1440 = vmatpush.xpose.msra.mxu0 0.0
    %1441 = vmatpush.xpose.msra.mxu0 0.0
    %1442 = vmatpush.xpose.msra.mxu0 0.0
    %1443 = vmatpush.xpose.msra.mxu0 %v118
    %1444 = vmatmul.f32.gmra.mxu0 %v257
    %v1445 = vpop.f32.mrf.mxu0
    %v1446 = vadd.f32 %v1426, %v1445
    %1447 = vdwg.mxu0
    %1448 = vmatpush.xpose.msra.mxu0 0.0
    %1449 = vmatpush.xpose.msra.mxu0 0.0
    %1450 = vmatpush.xpose.msra.mxu0 0.0
    %1451 = vmatpush.xpose.msra.mxu0 0.0
    %1452 = vmatpush.xpose.msra.mxu0 0.0
    %1453 = vmatpush.xpose.msra.mxu0 0.0
    %1454 = vmatpush.xpose.msra.mxu0 0.0
    %1455 = vmatpush.xpose.msra.mxu0 0.0
    %1456 = vmatpush.xpose.msra.mxu0 0.0
    %1457 = vmatpush.xpose.msra.mxu0 0.0
    %1458 = vmatpush.xpose.msra.mxu0 0.0
    %1459 = vmatpush.xpose.msra.mxu0 0.0
    %1460 = vmatpush.xpose.msra.mxu0 0.0
    %1461 = vmatpush.xpose.msra.mxu0 0.0
    %1462 = vmatpush.xpose.msra.mxu0 0.0
    %1463 = vmatpush.xpose.msra.mxu0 %v119
    %1464 = vmatmul.f32.gmra.mxu0 %v258
    %v1465 = vpop.f32.mrf.mxu0
    %v1466 = vadd.f32 %v1446, %v1465
    %1467 = vdwg.mxu0
    %1468 = vmatpush.xpose.msra.mxu0 0.0
    %1469 = vmatpush.xpose.msra.mxu0 0.0
    %1470 = vmatpush.xpose.msra.mxu0 0.0
    %1471 = vmatpush.xpose.msra.mxu0 0.0
    %1472 = vmatpush.xpose.msra.mxu0 0.0
    %1473 = vmatpush.xpose.msra.mxu0 0.0
    %1474 = vmatpush.xpose.msra.mxu0 0.0
    %1475 = vmatpush.xpose.msra.mxu0 0.0
    %1476 = vmatpush.xpose.msra.mxu0 0.0
    %1477 = vmatpush.xpose.msra.mxu0 0.0
    %1478 = vmatpush.xpose.msra.mxu0 0.0
    %1479 = vmatpush.xpose.msra.mxu0 0.0
    %1480 = vmatpush.xpose.msra.mxu0 0.0
    %1481 = vmatpush.xpose.msra.mxu0 0.0
    %1482 = vmatpush.xpose.msra.mxu0 0.0
    %1483 = vmatpush.xpose.msra.mxu0 %v120
    %1484 = vmatmul.f32.gmra.mxu0 %v259
    %v1485 = vpop.f32.mrf.mxu0
    %v1486 = vadd.f32 %v1466, %v1485
    %1487 = vdwg.mxu0
    %1488 = vmatpush.xpose.msra.mxu0 0.0
    %1489 = vmatpush.xpose.msra.mxu0 0.0
    %1490 = vmatpush.xpose.msra.mxu0 0.0
    %1491 = vmatpush.xpose.msra.mxu0 0.0
    %1492 = vmatpush.xpose.msra.mxu0 0.0
    %1493 = vmatpush.xpose.msra.mxu0 0.0
    %1494 = vmatpush.xpose.msra.mxu0 0.0
    %1495 = vmatpush.xpose.msra.mxu0 0.0
    %1496 = vmatpush.xpose.msra.mxu0 0.0
    %1497 = vmatpush.xpose.msra.mxu0 0.0
    %1498 = vmatpush.xpose.msra.mxu0 0.0
    %1499 = vmatpush.xpose.msra.mxu0 0.0
    %1500 = vmatpush.xpose.msra.mxu0 0.0
    %1501 = vmatpush.xpose.msra.mxu0 0.0
    %1502 = vmatpush.xpose.msra.mxu0 0.0
    %1503 = vmatpush.xpose.msra.mxu0 %v121
    %1504 = vmatmul.f32.gmra.mxu0 %v260
    %v1505 = vpop.f32.mrf.mxu0
    %v1506 = vadd.f32 %v1486, %v1505
    %1507 = vdwg.mxu0
    %1508 = vmatpush.xpose.msra.mxu0 0.0
    %1509 = vmatpush.xpose.msra.mxu0 0.0
    %1510 = vmatpush.xpose.msra.mxu0 0.0
    %1511 = vmatpush.xpose.msra.mxu0 0.0
    %1512 = vmatpush.xpose.msra.mxu0 0.0
    %1513 = vmatpush.xpose.msra.mxu0 0.0
    %1514 = vmatpush.xpose.msra.mxu0 0.0
    %1515 = vmatpush.xpose.msra.mxu0 0.0
    %1516 = vmatpush.xpose.msra.mxu0 0.0
    %1517 = vmatpush.xpose.msra.mxu0 0.0
    %1518 = vmatpush.xpose.msra.mxu0 0.0
    %1519 = vmatpush.xpose.msra.mxu0 0.0
    %1520 = vmatpush.xpose.msra.mxu0 0.0
    %1521 = vmatpush.xpose.msra.mxu0 0.0
    %1522 = vmatpush.xpose.msra.mxu0 0.0
    %1523 = vmatpush.xpose.msra.mxu0 %v122
    %1524 = vmatmul.f32.gmra.mxu0 %v261
    %v1525 = vpop.f32.mrf.mxu0
    %v1526 = vadd.f32 %v1506, %v1525
    %1527 = vdwg.mxu0
    %1528 = vmatpush.xpose.msra.mxu0 0.0
    %1529 = vmatpush.xpose.msra.mxu0 0.0
    %1530 = vmatpush.xpose.msra.mxu0 0.0
    %1531 = vmatpush.xpose.msra.mxu0 0.0
    %1532 = vmatpush.xpose.msra.mxu0 0.0
    %1533 = vmatpush.xpose.msra.mxu0 0.0
    %1534 = vmatpush.xpose.msra.mxu0 0.0
    %1535 = vmatpush.xpose.msra.mxu0 0.0
    %1536 = vmatpush.xpose.msra.mxu0 0.0
    %1537 = vmatpush.xpose.msra.mxu0 0.0
    %1538 = vmatpush.xpose.msra.mxu0 0.0
    %1539 = vmatpush.xpose.msra.mxu0 0.0
    %1540 = vmatpush.xpose.msra.mxu0 0.0
    %1541 = vmatpush.xpose.msra.mxu0 0.0
    %1542 = vmatpush.xpose.msra.mxu0 0.0
    %1543 = vmatpush.xpose.msra.mxu0 %v123
    %1544 = vmatmul.f32.gmra.mxu0 %v264
    %v1545 = vpop.f32.mrf.mxu0
    %v1546 = vadd.f32 %v1526, %v1545
    %1547 = vdwg.mxu0
    %1548 = vmatpush.xpose.msra.mxu0 0.0
    %1549 = vmatpush.xpose.msra.mxu0 0.0
    %1550 = vmatpush.xpose.msra.mxu0 0.0
    %1551 = vmatpush.xpose.msra.mxu0 0.0
    %1552 = vmatpush.xpose.msra.mxu0 0.0
    %1553 = vmatpush.xpose.msra.mxu0 0.0
    %1554 = vmatpush.xpose.msra.mxu0 0.0
    %1555 = vmatpush.xpose.msra.mxu0 0.0
    %1556 = vmatpush.xpose.msra.mxu0 0.0
    %1557 = vmatpush.xpose.msra.mxu0 0.0
    %1558 = vmatpush.xpose.msra.mxu0 0.0
    %1559 = vmatpush.xpose.msra.mxu0 0.0
    %1560 = vmatpush.xpose.msra.mxu0 0.0
    %1561 = vmatpush.xpose.msra.mxu0 0.0
    %1562 = vmatpush.xpose.msra.mxu0 0.0
    %1563 = vmatpush.xpose.msra.mxu0 %v124
    %1564 = vmatmul.f32.gmra.mxu0 %v265
    %v1565 = vpop.f32.mrf.mxu0
    %v1566 = vadd.f32 %v1546, %v1565
    %1567 = vdwg.mxu0
    %1568 = vmatpush.xpose.msra.mxu0 0.0
    %1569 = vmatpush.xpose.msra.mxu0 0.0
    %1570 = vmatpush.xpose.msra.mxu0 0.0
    %1571 = vmatpush.xpose.msra.mxu0 0.0
    %1572 = vmatpush.xpose.msra.mxu0 0.0
    %1573 = vmatpush.xpose.msra.mxu0 0.0
    %1574 = vmatpush.xpose.msra.mxu0 0.0
    %1575 = vmatpush.xpose.msra.mxu0 0.0
    %1576 = vmatpush.xpose.msra.mxu0 0.0
    %1577 = vmatpush.xpose.msra.mxu0 0.0
    %1578 = vmatpush.xpose.msra.mxu0 0.0
    %1579 = vmatpush.xpose.msra.mxu0 0.0
    %1580 = vmatpush.xpose.msra.mxu0 0.0
    %1581 = vmatpush.xpose.msra.mxu0 0.0
    %1582 = vmatpush.xpose.msra.mxu0 0.0
    %1583 = vmatpush.xpose.msra.mxu0 %v125
    %1584 = vmatmul.f32.gmra.mxu0 %v266
    %v1585 = vpop.f32.mrf.mxu0
    %v1586 = vadd.f32 %v1566, %v1585
    %1587 = vdwg.mxu0
    %1588 = vmatpush.xpose.msra.mxu0 0.0
    %1589 = vmatpush.xpose.msra.mxu0 0.0
    %1590 = vmatpush.xpose.msra.mxu0 0.0
    %1591 = vmatpush.xpose.msra.mxu0 0.0
    %1592 = vmatpush.xpose.msra.mxu0 0.0
    %1593 = vmatpush.xpose.msra.mxu0 0.0
    %1594 = vmatpush.xpose.msra.mxu0 0.0
    %1595 = vmatpush.xpose.msra.mxu0 0.0
    %1596 = vmatpush.xpose.msra.mxu0 0.0
    %1597 = vmatpush.xpose.msra.mxu0 0.0
    %1598 = vmatpush.xpose.msra.mxu0 0.0
    %1599 = vmatpush.xpose.msra.mxu0 0.0
    %1600 = vmatpush.xpose.msra.mxu0 0.0
    %1601 = vmatpush.xpose.msra.mxu0 0.0
    %1602 = vmatpush.xpose.msra.mxu0 0.0
    %1603 = vmatpush.xpose.msra.mxu0 %v126
    %1604 = vmatmul.f32.gmra.mxu0 %v267
    %v1605 = vpop.f32.mrf.mxu0
    %v1606 = vadd.f32 %v1586, %v1605
    %1607 = vdwg.mxu0
    %1608 = vmatpush.xpose.msra.mxu0 0.0
    %1609 = vmatpush.xpose.msra.mxu0 0.0
    %1610 = vmatpush.xpose.msra.mxu0 0.0
    %1611 = vmatpush.xpose.msra.mxu0 0.0
    %1612 = vmatpush.xpose.msra.mxu0 0.0
    %1613 = vmatpush.xpose.msra.mxu0 0.0
    %1614 = vmatpush.xpose.msra.mxu0 0.0
    %1615 = vmatpush.xpose.msra.mxu0 0.0
    %1616 = vmatpush.xpose.msra.mxu0 0.0
    %1617 = vmatpush.xpose.msra.mxu0 0.0
    %1618 = vmatpush.xpose.msra.mxu0 0.0
    %1619 = vmatpush.xpose.msra.mxu0 0.0
    %1620 = vmatpush.xpose.msra.mxu0 0.0
    %1621 = vmatpush.xpose.msra.mxu0 0.0
    %1622 = vmatpush.xpose.msra.mxu0 0.0
    %1623 = vmatpush.xpose.msra.mxu0 %v127
    %1624 = vmatmul.f32.gmra.mxu0 %v268
    %v1625 = vpop.f32.mrf.mxu0
    %v1626 = vadd.f32 %v1606, %v1625
    %1627 = vdwg.mxu0
    %1628 = vmatpush.xpose.msra.mxu0 0.0
    %1629 = vmatpush.xpose.msra.mxu0 0.0
    %1630 = vmatpush.xpose.msra.mxu0 0.0
    %1631 = vmatpush.xpose.msra.mxu0 0.0
    %1632 = vmatpush.xpose.msra.mxu0 0.0
    %1633 = vmatpush.xpose.msra.mxu0 0.0
    %1634 = vmatpush.xpose.msra.mxu0 0.0
    %1635 = vmatpush.xpose.msra.mxu0 0.0
    %1636 = vmatpush.xpose.msra.mxu0 0.0
    %1637 = vmatpush.xpose.msra.mxu0 0.0
    %1638 = vmatpush.xpose.msra.mxu0 0.0
    %1639 = vmatpush.xpose.msra.mxu0 0.0
    %1640 = vmatpush.xpose.msra.mxu0 0.0
    %1641 = vmatpush.xpose.msra.mxu0 0.0
    %1642 = vmatpush.xpose.msra.mxu0 0.0
    %1643 = vmatpush.xpose.msra.mxu0 %v128
    %1644 = vmatmul.f32.gmra.mxu0 %v269
    %v1645 = vpop.f32.mrf.mxu0
    %v1646 = vadd.f32 %v1626, %v1645
    %1647 = vdwg.mxu0
    %1648 = vmatpush.xpose.msra.mxu0 0.0
    %1649 = vmatpush.xpose.msra.mxu0 0.0
    %1650 = vmatpush.xpose.msra.mxu0 0.0
    %1651 = vmatpush.xpose.msra.mxu0 0.0
    %1652 = vmatpush.xpose.msra.mxu0 0.0
    %1653 = vmatpush.xpose.msra.mxu0 0.0
    %1654 = vmatpush.xpose.msra.mxu0 0.0
    %1655 = vmatpush.xpose.msra.mxu0 0.0
    %1656 = vmatpush.xpose.msra.mxu0 0.0
    %1657 = vmatpush.xpose.msra.mxu0 0.0
    %1658 = vmatpush.xpose.msra.mxu0 0.0
    %1659 = vmatpush.xpose.msra.mxu0 0.0
    %1660 = vmatpush.xpose.msra.mxu0 0.0
    %1661 = vmatpush.xpose.msra.mxu0 0.0
    %1662 = vmatpush.xpose.msra.mxu0 0.0
    %1663 = vmatpush.xpose.msra.mxu0 %v129
    %1664 = vmatmul.f32.gmra.mxu0 %v270
    %v1665 = vpop.f32.mrf.mxu0
    %v1666 = vadd.f32 %v1646, %v1665
    %1667 = vdwg.mxu0
    %1668 = vmatpush.xpose.msra.mxu0 0.0
    %1669 = vmatpush.xpose.msra.mxu0 0.0
    %1670 = vmatpush.xpose.msra.mxu0 0.0
    %1671 = vmatpush.xpose.msra.mxu0 0.0
    %1672 = vmatpush.xpose.msra.mxu0 0.0
    %1673 = vmatpush.xpose.msra.mxu0 0.0
    %1674 = vmatpush.xpose.msra.mxu0 0.0
    %1675 = vmatpush.xpose.msra.mxu0 0.0
    %1676 = vmatpush.xpose.msra.mxu0 0.0
    %1677 = vmatpush.xpose.msra.mxu0 0.0
    %1678 = vmatpush.xpose.msra.mxu0 0.0
    %1679 = vmatpush.xpose.msra.mxu0 0.0
    %1680 = vmatpush.xpose.msra.mxu0 0.0
    %1681 = vmatpush.xpose.msra.mxu0 0.0
    %1682 = vmatpush.xpose.msra.mxu0 0.0
    %1683 = vmatpush.xpose.msra.mxu0 %v130
    %1684 = vmatmul.f32.gmra.mxu0 %v271
    %v1685 = vpop.f32.mrf.mxu0
    %v1686 = vadd.f32 %v1666, %v1685
    %1687 = vdwg.mxu0
    %1688 = vmatpush.xpose.msra.mxu0 0.0
    %1689 = vmatpush.xpose.msra.mxu0 0.0
    %1690 = vmatpush.xpose.msra.mxu0 0.0
    %1691 = vmatpush.xpose.msra.mxu0 0.0
    %1692 = vmatpush.xpose.msra.mxu0 0.0
    %1693 = vmatpush.xpose.msra.mxu0 0.0
    %1694 = vmatpush.xpose.msra.mxu0 0.0
    %1695 = vmatpush.xpose.msra.mxu0 0.0
    %1696 = vmatpush.xpose.msra.mxu0 0.0
    %1697 = vmatpush.xpose.msra.mxu0 0.0
    %1698 = vmatpush.xpose.msra.mxu0 0.0
    %1699 = vmatpush.xpose.msra.mxu0 0.0
    %1700 = vmatpush.xpose.msra.mxu0 0.0
    %1701 = vmatpush.xpose.msra.mxu0 0.0
    %1702 = vmatpush.xpose.msra.mxu0 0.0
    %1703 = vmatpush.xpose.msra.mxu0 %v131
    %1704 = vmatmul.f32.gmra.mxu0 %v274
    %v1705 = vpop.f32.mrf.mxu0
    %v1706 = vadd.f32 %v1686, %v1705
    %1707 = vdwg.mxu0
    %1708 = vmatpush.xpose.msra.mxu0 0.0
    %1709 = vmatpush.xpose.msra.mxu0 0.0
    %1710 = vmatpush.xpose.msra.mxu0 0.0
    %1711 = vmatpush.xpose.msra.mxu0 0.0
    %1712 = vmatpush.xpose.msra.mxu0 0.0
    %1713 = vmatpush.xpose.msra.mxu0 0.0
    %1714 = vmatpush.xpose.msra.mxu0 0.0
    %1715 = vmatpush.xpose.msra.mxu0 0.0
    %1716 = vmatpush.xpose.msra.mxu0 0.0
    %1717 = vmatpush.xpose.msra.mxu0 0.0
    %1718 = vmatpush.xpose.msra.mxu0 0.0
    %1719 = vmatpush.xpose.msra.mxu0 0.0
    %1720 = vmatpush.xpose.msra.mxu0 0.0
    %1721 = vmatpush.xpose.msra.mxu0 0.0
    %1722 = vmatpush.xpose.msra.mxu0 0.0
    %1723 = vmatpush.xpose.msra.mxu0 %v132
    %1724 = vmatmul.f32.gmra.mxu0 %v275
    %v1725 = vpop.f32.mrf.mxu0
    %v1726 = vadd.f32 %v1706, %v1725
    %1727 = vdwg.mxu0
    %1728 = vmatpush.xpose.msra.mxu0 0.0
    %1729 = vmatpush.xpose.msra.mxu0 0.0
    %1730 = vmatpush.xpose.msra.mxu0 0.0
    %1731 = vmatpush.xpose.msra.mxu0 0.0
    %1732 = vmatpush.xpose.msra.mxu0 0.0
    %1733 = vmatpush.xpose.msra.mxu0 0.0
    %1734 = vmatpush.xpose.msra.mxu0 0.0
    %1735 = vmatpush.xpose.msra.mxu0 0.0
    %1736 = vmatpush.xpose.msra.mxu0 0.0
    %1737 = vmatpush.xpose.msra.mxu0 0.0
    %1738 = vmatpush.xpose.msra.mxu0 0.0
    %1739 = vmatpush.xpose.msra.mxu0 0.0
    %1740 = vmatpush.xpose.msra.mxu0 0.0
    %1741 = vmatpush.xpose.msra.mxu0 0.0
    %1742 = vmatpush.xpose.msra.mxu0 0.0
    %1743 = vmatpush.xpose.msra.mxu0 %v133
    %1744 = vmatmul.f32.gmra.mxu0 %v276
    %v1745 = vpop.f32.mrf.mxu0
    %v1746 = vadd.f32 %v1726, %v1745
    %1747 = vdwg.mxu0
    %1748 = vmatpush.xpose.msra.mxu0 0.0
    %1749 = vmatpush.xpose.msra.mxu0 0.0
    %1750 = vmatpush.xpose.msra.mxu0 0.0
    %1751 = vmatpush.xpose.msra.mxu0 0.0
    %1752 = vmatpush.xpose.msra.mxu0 0.0
    %1753 = vmatpush.xpose.msra.mxu0 0.0
    %1754 = vmatpush.xpose.msra.mxu0 0.0
    %1755 = vmatpush.xpose.msra.mxu0 0.0
    %1756 = vmatpush.xpose.msra.mxu0 0.0
    %1757 = vmatpush.xpose.msra.mxu0 0.0
    %1758 = vmatpush.xpose.msra.mxu0 0.0
    %1759 = vmatpush.xpose.msra.mxu0 0.0
    %1760 = vmatpush.xpose.msra.mxu0 0.0
    %1761 = vmatpush.xpose.msra.mxu0 0.0
    %1762 = vmatpush.xpose.msra.mxu0 0.0
    %1763 = vmatpush.xpose.msra.mxu0 %v134
    %1764 = vmatmul.f32.gmra.mxu0 %v277
    %v1765 = vpop.f32.mrf.mxu0
    %v1766 = vadd.f32 %v1746, %v1765
    %1767 = vdwg.mxu0
    %1768 = vmatpush.xpose.msra.mxu0 0.0
    %1769 = vmatpush.xpose.msra.mxu0 0.0
    %1770 = vmatpush.xpose.msra.mxu0 0.0
    %1771 = vmatpush.xpose.msra.mxu0 0.0
    %1772 = vmatpush.xpose.msra.mxu0 0.0
    %1773 = vmatpush.xpose.msra.mxu0 0.0
    %1774 = vmatpush.xpose.msra.mxu0 0.0
    %1775 = vmatpush.xpose.msra.mxu0 0.0
    %1776 = vmatpush.xpose.msra.mxu0 0.0
    %1777 = vmatpush.xpose.msra.mxu0 0.0
    %1778 = vmatpush.xpose.msra.mxu0 0.0
    %1779 = vmatpush.xpose.msra.mxu0 0.0
    %1780 = vmatpush.xpose.msra.mxu0 0.0
    %1781 = vmatpush.xpose.msra.mxu0 0.0
    %1782 = vmatpush.xpose.msra.mxu0 0.0
    %1783 = vmatpush.xpose.msra.mxu0 %v135
    %1784 = vmatmul.f32.gmra.mxu0 %v278
    %v1785 = vpop.f32.mrf.mxu0
    %v1786 = vadd.f32 %v1766, %v1785
    %1787 = vdwg.mxu0
    %1788 = vmatpush.xpose.msra.mxu0 0.0
    %1789 = vmatpush.xpose.msra.mxu0 0.0
    %1790 = vmatpush.xpose.msra.mxu0 0.0
    %1791 = vmatpush.xpose.msra.mxu0 0.0
    %1792 = vmatpush.xpose.msra.mxu0 0.0
    %1793 = vmatpush.xpose.msra.mxu0 0.0
    %1794 = vmatpush.xpose.msra.mxu0 0.0
    %1795 = vmatpush.xpose.msra.mxu0 0.0
    %1796 = vmatpush.xpose.msra.mxu0 0.0
    %1797 = vmatpush.xpose.msra.mxu0 0.0
    %1798 = vmatpush.xpose.msra.mxu0 0.0
    %1799 = vmatpush.xpose.msra.mxu0 0.0
    %1800 = vmatpush.xpose.msra.mxu0 0.0
    %1801 = vmatpush.xpose.msra.mxu0 0.0
    %1802 = vmatpush.xpose.msra.mxu0 0.0
    %1803 = vmatpush.xpose.msra.mxu0 %v136
    %1804 = vmatmul.f32.gmra.mxu0 %v279
    %v1805 = vpop.f32.mrf.mxu0
    %v1806 = vadd.f32 %v1786, %v1805
    %1807 = vdwg.mxu0
    %1808 = vmatpush.xpose.msra.mxu0 0.0
    %1809 = vmatpush.xpose.msra.mxu0 0.0
    %1810 = vmatpush.xpose.msra.mxu0 0.0
    %1811 = vmatpush.xpose.msra.mxu0 0.0
    %1812 = vmatpush.xpose.msra.mxu0 0.0
    %1813 = vmatpush.xpose.msra.mxu0 0.0
    %1814 = vmatpush.xpose.msra.mxu0 0.0
    %1815 = vmatpush.xpose.msra.mxu0 0.0
    %1816 = vmatpush.xpose.msra.mxu0 0.0
    %1817 = vmatpush.xpose.msra.mxu0 0.0
    %1818 = vmatpush.xpose.msra.mxu0 0.0
    %1819 = vmatpush.xpose.msra.mxu0 0.0
    %1820 = vmatpush.xpose.msra.mxu0 0.0
    %1821 = vmatpush.xpose.msra.mxu0 0.0
    %1822 = vmatpush.xpose.msra.mxu0 0.0
    %1823 = vmatpush.xpose.msra.mxu0 %v137
    %1824 = vmatmul.f32.gmra.mxu0 %v280
    %v1825 = vpop.f32.mrf.mxu0
    %v1826 = vadd.f32 %v1806, %v1825
    %1827 = vdwg.mxu0
    %1828 = vmatpush.xpose.msra.mxu0 0.0
    %1829 = vmatpush.xpose.msra.mxu0 0.0
    %1830 = vmatpush.xpose.msra.mxu0 0.0
    %1831 = vmatpush.xpose.msra.mxu0 0.0
    %1832 = vmatpush.xpose.msra.mxu0 0.0
    %1833 = vmatpush.xpose.msra.mxu0 0.0
    %1834 = vmatpush.xpose.msra.mxu0 0.0
    %1835 = vmatpush.xpose.msra.mxu0 0.0
    %1836 = vmatpush.xpose.msra.mxu0 0.0
    %1837 = vmatpush.xpose.msra.mxu0 0.0
    %1838 = vmatpush.xpose.msra.mxu0 0.0
    %1839 = vmatpush.xpose.msra.mxu0 0.0
    %1840 = vmatpush.xpose.msra.mxu0 0.0
    %1841 = vmatpush.xpose.msra.mxu0 0.0
    %1842 = vmatpush.xpose.msra.mxu0 0.0
    %1843 = vmatpush.xpose.msra.mxu0 %v138
    %1844 = vmatmul.f32.gmra.mxu0 %v281
    %v1845 = vpop.f32.mrf.mxu0
    %v1846 = vadd.f32 %v1826, %v1845
    %1847 = vdwg.mxu0
    %1848 = vmatpush.xpose.msra.mxu0 0.0
    %1849 = vmatpush.xpose.msra.mxu0 0.0
    %1850 = vmatpush.xpose.msra.mxu0 0.0
    %1851 = vmatpush.xpose.msra.mxu0 0.0
    %1852 = vmatpush.xpose.msra.mxu0 0.0
    %1853 = vmatpush.xpose.msra.mxu0 0.0
    %1854 = vmatpush.xpose.msra.mxu0 0.0
    %1855 = vmatpush.xpose.msra.mxu0 0.0
    %1856 = vmatpush.xpose.msra.mxu0 0.0
    %1857 = vmatpush.xpose.msra.mxu0 0.0
    %1858 = vmatpush.xpose.msra.mxu0 0.0
    %1859 = vmatpush.xpose.msra.mxu0 0.0
    %1860 = vmatpush.xpose.msra.mxu0 0.0
    %1861 = vmatpush.xpose.msra.mxu0 0.0
    %1862 = vmatpush.xpose.msra.mxu0 0.0
    %1863 = vmatpush.xpose.msra.mxu0 %v139
    %1864 = vmatmul.f32.gmra.mxu0 %v284
    %v1865 = vpop.f32.mrf.mxu0
    %v1866 = vadd.f32 %v1846, %v1865
    %1867 = vdwg.mxu0
    %1868 = vmatpush.xpose.msra.mxu0 0.0
    %1869 = vmatpush.xpose.msra.mxu0 0.0
    %1870 = vmatpush.xpose.msra.mxu0 0.0
    %1871 = vmatpush.xpose.msra.mxu0 0.0
    %1872 = vmatpush.xpose.msra.mxu0 0.0
    %1873 = vmatpush.xpose.msra.mxu0 0.0
    %1874 = vmatpush.xpose.msra.mxu0 0.0
    %1875 = vmatpush.xpose.msra.mxu0 0.0
    %1876 = vmatpush.xpose.msra.mxu0 0.0
    %1877 = vmatpush.xpose.msra.mxu0 0.0
    %1878 = vmatpush.xpose.msra.mxu0 0.0
    %1879 = vmatpush.xpose.msra.mxu0 0.0
    %1880 = vmatpush.xpose.msra.mxu0 0.0
    %1881 = vmatpush.xpose.msra.mxu0 0.0
    %1882 = vmatpush.xpose.msra.mxu0 0.0
    %1883 = vmatpush.xpose.msra.mxu0 %v140
    %1884 = vmatmul.f32.gmra.mxu0 %v285
    %v1885 = vpop.f32.mrf.mxu0
    %v1886 = vadd.f32 %v1866, %v1885
    %1887 = vdwg.mxu0
    %1888 = vmatpush.xpose.msra.mxu0 0.0
    %1889 = vmatpush.xpose.msra.mxu0 0.0
    %1890 = vmatpush.xpose.msra.mxu0 0.0
    %1891 = vmatpush.xpose.msra.mxu0 0.0
    %1892 = vmatpush.xpose.msra.mxu0 0.0
    %1893 = vmatpush.xpose.msra.mxu0 0.0
    %1894 = vmatpush.xpose.msra.mxu0 0.0
    %1895 = vmatpush.xpose.msra.mxu0 0.0
    %1896 = vmatpush.xpose.msra.mxu0 0.0
    %1897 = vmatpush.xpose.msra.mxu0 0.0
    %1898 = vmatpush.xpose.msra.mxu0 0.0
    %1899 = vmatpush.xpose.msra.mxu0 0.0
    %1900 = vmatpush.xpose.msra.mxu0 0.0
    %1901 = vmatpush.xpose.msra.mxu0 0.0
    %1902 = vmatpush.xpose.msra.mxu0 0.0
    %1903 = vmatpush.xpose.msra.mxu0 %v141
    %1904 = vmatmul.f32.gmra.mxu0 %v286
    %v1905 = vpop.f32.mrf.mxu0
    %v1906 = vadd.f32 %v1886, %v1905
    %1907 = vdwg.mxu0
    %1908 = vmatpush.xpose.msra.mxu0 0.0
    %1909 = vmatpush.xpose.msra.mxu0 0.0
    %1910 = vmatpush.xpose.msra.mxu0 0.0
    %1911 = vmatpush.xpose.msra.mxu0 0.0
    %1912 = vmatpush.xpose.msra.mxu0 0.0
    %1913 = vmatpush.xpose.msra.mxu0 0.0
    %1914 = vmatpush.xpose.msra.mxu0 0.0
    %1915 = vmatpush.xpose.msra.mxu0 0.0
    %1916 = vmatpush.xpose.msra.mxu0 0.0
    %1917 = vmatpush.xpose.msra.mxu0 0.0
    %1918 = vmatpush.xpose.msra.mxu0 0.0
    %1919 = vmatpush.xpose.msra.mxu0 0.0
    %1920 = vmatpush.xpose.msra.mxu0 0.0
    %1921 = vmatpush.xpose.msra.mxu0 0.0
    %1922 = vmatpush.xpose.msra.mxu0 0.0
    %1923 = vmatpush.xpose.msra.mxu0 %v142
    %1924 = vmatmul.f32.gmra.mxu0 %v287
    %v1925 = vpop.f32.mrf.mxu0
    %v1926 = vadd.f32 %v1906, %v1925
    %1927 = vdwg.mxu0
    %1928 = vmatpush.xpose.msra.mxu0 0.0
    %1929 = vmatpush.xpose.msra.mxu0 0.0
    %1930 = vmatpush.xpose.msra.mxu0 0.0
    %1931 = vmatpush.xpose.msra.mxu0 0.0
    %1932 = vmatpush.xpose.msra.mxu0 0.0
    %1933 = vmatpush.xpose.msra.mxu0 0.0
    %1934 = vmatpush.xpose.msra.mxu0 0.0
    %1935 = vmatpush.xpose.msra.mxu0 0.0
    %1936 = vmatpush.xpose.msra.mxu0 0.0
    %1937 = vmatpush.xpose.msra.mxu0 0.0
    %1938 = vmatpush.xpose.msra.mxu0 0.0
    %1939 = vmatpush.xpose.msra.mxu0 0.0
    %1940 = vmatpush.xpose.msra.mxu0 0.0
    %1941 = vmatpush.xpose.msra.mxu0 0.0
    %1942 = vmatpush.xpose.msra.mxu0 0.0
    %1943 = vmatpush.xpose.msra.mxu0 %v143
    %1944 = vmatmul.f32.gmra.mxu0 %v288
    %v1945 = vpop.f32.mrf.mxu0
    %v1946 = vadd.f32 %v1926, %v1945
    %1947 = vdwg.mxu0
    %1948 = vmatpush.xpose.msra.mxu0 0.0
    %1949 = vmatpush.xpose.msra.mxu0 0.0
    %1950 = vmatpush.xpose.msra.mxu0 0.0
    %1951 = vmatpush.xpose.msra.mxu0 0.0
    %1952 = vmatpush.xpose.msra.mxu0 0.0
    %1953 = vmatpush.xpose.msra.mxu0 0.0
    %1954 = vmatpush.xpose.msra.mxu0 0.0
    %1955 = vmatpush.xpose.msra.mxu0 0.0
    %1956 = vmatpush.xpose.msra.mxu0 0.0
    %1957 = vmatpush.xpose.msra.mxu0 0.0
    %1958 = vmatpush.xpose.msra.mxu0 0.0
    %1959 = vmatpush.xpose.msra.mxu0 0.0
    %1960 = vmatpush.xpose.msra.mxu0 0.0
    %1961 = vmatpush.xpose.msra.mxu0 0.0
    %1962 = vmatpush.xpose.msra.mxu0 0.0
    %1963 = vmatpush.xpose.msra.mxu0 %v144
    %1964 = vmatmul.f32.gmra.mxu0 %v289
    %v1965 = vpop.f32.mrf.mxu0
    %v1966 = vadd.f32 %v1946, %v1965
    %1967 = vdwg.mxu0
    %1968 = vmatpush.xpose.msra.mxu0 0.0
    %1969 = vmatpush.xpose.msra.mxu0 0.0
    %1970 = vmatpush.xpose.msra.mxu0 0.0
    %1971 = vmatpush.xpose.msra.mxu0 0.0
    %1972 = vmatpush.xpose.msra.mxu0 0.0
    %1973 = vmatpush.xpose.msra.mxu0 0.0
    %1974 = vmatpush.xpose.msra.mxu0 0.0
    %1975 = vmatpush.xpose.msra.mxu0 0.0
    %1976 = vmatpush.xpose.msra.mxu0 0.0
    %1977 = vmatpush.xpose.msra.mxu0 0.0
    %1978 = vmatpush.xpose.msra.mxu0 0.0
    %1979 = vmatpush.xpose.msra.mxu0 0.0
    %1980 = vmatpush.xpose.msra.mxu0 0.0
    %1981 = vmatpush.xpose.msra.mxu0 0.0
    %1982 = vmatpush.xpose.msra.mxu0 0.0
    %1983 = vmatpush.xpose.msra.mxu0 %v145
    %1984 = vmatmul.f32.gmra.mxu0 %v290
    %v1985 = vpop.f32.mrf.mxu0
    %v1986 = vadd.f32 %v1966, %v1985
    %1987 = vdwg.mxu0
    %1988 = vmatpush.xpose.msra.mxu0 0.0
    %1989 = vmatpush.xpose.msra.mxu0 0.0
    %1990 = vmatpush.xpose.msra.mxu0 0.0
    %1991 = vmatpush.xpose.msra.mxu0 0.0
    %1992 = vmatpush.xpose.msra.mxu0 0.0
    %1993 = vmatpush.xpose.msra.mxu0 0.0
    %1994 = vmatpush.xpose.msra.mxu0 0.0
    %1995 = vmatpush.xpose.msra.mxu0 0.0
    %1996 = vmatpush.xpose.msra.mxu0 0.0
    %1997 = vmatpush.xpose.msra.mxu0 0.0
    %1998 = vmatpush.xpose.msra.mxu0 0.0
    %1999 = vmatpush.xpose.msra.mxu0 0.0
    %2000 = vmatpush.xpose.msra.mxu0 0.0
    %2001 = vmatpush.xpose.msra.mxu0 0.0
    %2002 = vmatpush.xpose.msra.mxu0 0.0
    %2003 = vmatpush.xpose.msra.mxu0 %v146
    %2004 = vmatmul.f32.gmra.mxu0 %v291
    %v2005 = vpop.f32.mrf.mxu0
    %v2006 = vadd.f32 %v1986, %v2005
    %2007 = vdwg.mxu0
    %2008 = vmatpush.xpose.msra.mxu0 0.0
    %2009 = vmatpush.xpose.msra.mxu0 0.0
    %2010 = vmatpush.xpose.msra.mxu0 0.0
    %2011 = vmatpush.xpose.msra.mxu0 0.0
    %2012 = vmatpush.xpose.msra.mxu0 0.0
    %2013 = vmatpush.xpose.msra.mxu0 0.0
    %2014 = vmatpush.xpose.msra.mxu0 0.0
    %2015 = vmatpush.xpose.msra.mxu0 0.0
    %2016 = vmatpush.xpose.msra.mxu0 0.0
    %2017 = vmatpush.xpose.msra.mxu0 0.0
    %2018 = vmatpush.xpose.msra.mxu0 0.0
    %2019 = vmatpush.xpose.msra.mxu0 0.0
    %2020 = vmatpush.xpose.msra.mxu0 0.0
    %2021 = vmatpush.xpose.msra.mxu0 0.0
    %2022 = vmatpush.xpose.msra.mxu0 0.0
    %2023 = vmatpush.xpose.msra.mxu0 %v147
    %2024 = vmatmul.f32.gmra.mxu0 %v294
    %v2025 = vpop.f32.mrf.mxu0
    %v2026 = vadd.f32 %v2006, %v2025
    %2027 = vdwg.mxu0
    %2028 = vmatpush.xpose.msra.mxu0 0.0
    %2029 = vmatpush.xpose.msra.mxu0 0.0
    %2030 = vmatpush.xpose.msra.mxu0 0.0
    %2031 = vmatpush.xpose.msra.mxu0 0.0
    %2032 = vmatpush.xpose.msra.mxu0 0.0
    %2033 = vmatpush.xpose.msra.mxu0 0.0
    %2034 = vmatpush.xpose.msra.mxu0 0.0
    %2035 = vmatpush.xpose.msra.mxu0 0.0
    %2036 = vmatpush.xpose.msra.mxu0 0.0
    %2037 = vmatpush.xpose.msra.mxu0 0.0
    %2038 = vmatpush.xpose.msra.mxu0 0.0
    %2039 = vmatpush.xpose.msra.mxu0 0.0
    %2040 = vmatpush.xpose.msra.mxu0 0.0
    %2041 = vmatpush.xpose.msra.mxu0 0.0
    %2042 = vmatpush.xpose.msra.mxu0 0.0
    %2043 = vmatpush.xpose.msra.mxu0 %v148
    %2044 = vmatmul.f32.gmra.mxu0 %v295
    %v2045 = vpop.f32.mrf.mxu0
    %v2046 = vadd.f32 %v2026, %v2045
    %2047 = vdwg.mxu0
    %2048 = vmatpush.xpose.msra.mxu0 0.0
    %2049 = vmatpush.xpose.msra.mxu0 0.0
    %2050 = vmatpush.xpose.msra.mxu0 0.0
    %2051 = vmatpush.xpose.msra.mxu0 0.0
    %2052 = vmatpush.xpose.msra.mxu0 0.0
    %2053 = vmatpush.xpose.msra.mxu0 0.0
    %2054 = vmatpush.xpose.msra.mxu0 0.0
    %2055 = vmatpush.xpose.msra.mxu0 0.0
    %2056 = vmatpush.xpose.msra.mxu0 0.0
    %2057 = vmatpush.xpose.msra.mxu0 0.0
    %2058 = vmatpush.xpose.msra.mxu0 0.0
    %2059 = vmatpush.xpose.msra.mxu0 0.0
    %2060 = vmatpush.xpose.msra.mxu0 0.0
    %2061 = vmatpush.xpose.msra.mxu0 0.0
    %2062 = vmatpush.xpose.msra.mxu0 0.0
    %2063 = vmatpush.xpose.msra.mxu0 %v149
    %2064 = vmatmul.f32.gmra.mxu0 %v296
    %v2065 = vpop.f32.mrf.mxu0
    %v2066 = vadd.f32 %v2046, %v2065
    %2067 = vdwg.mxu0
    %2068 = vmatpush.xpose.msra.mxu0 0.0
    %2069 = vmatpush.xpose.msra.mxu0 0.0
    %2070 = vmatpush.xpose.msra.mxu0 0.0
    %2071 = vmatpush.xpose.msra.mxu0 0.0
    %2072 = vmatpush.xpose.msra.mxu0 0.0
    %2073 = vmatpush.xpose.msra.mxu0 0.0
    %2074 = vmatpush.xpose.msra.mxu0 0.0
    %2075 = vmatpush.xpose.msra.mxu0 0.0
    %2076 = vmatpush.xpose.msra.mxu0 0.0
    %2077 = vmatpush.xpose.msra.mxu0 0.0
    %2078 = vmatpush.xpose.msra.mxu0 0.0
    %2079 = vmatpush.xpose.msra.mxu0 0.0
    %2080 = vmatpush.xpose.msra.mxu0 0.0
    %2081 = vmatpush.xpose.msra.mxu0 0.0
    %2082 = vmatpush.xpose.msra.mxu0 0.0
    %2083 = vmatpush.xpose.msra.mxu0 %v150
    %2084 = vmatmul.f32.gmra.mxu0 %v297
    %v2085 = vpop.f32.mrf.mxu0
    %v2086 = vadd.f32 %v2066, %v2085
    %2087 = vdwg.mxu0
    %2088 = vmatpush.xpose.msra.mxu0 0.0
    %2089 = vmatpush.xpose.msra.mxu0 0.0
    %2090 = vmatpush.xpose.msra.mxu0 0.0
    %2091 = vmatpush.xpose.msra.mxu0 0.0
    %2092 = vmatpush.xpose.msra.mxu0 0.0
    %2093 = vmatpush.xpose.msra.mxu0 0.0
    %2094 = vmatpush.xpose.msra.mxu0 0.0
    %2095 = vmatpush.xpose.msra.mxu0 0.0
    %2096 = vmatpush.xpose.msra.mxu0 0.0
    %2097 = vmatpush.xpose.msra.mxu0 0.0
    %2098 = vmatpush.xpose.msra.mxu0 0.0
    %2099 = vmatpush.xpose.msra.mxu0 0.0
    %2100 = vmatpush.xpose.msra.mxu0 0.0
    %2101 = vmatpush.xpose.msra.mxu0 0.0
    %2102 = vmatpush.xpose.msra.mxu0 0.0
    %2103 = vmatpush.xpose.msra.mxu0 %v151
    %2104 = vmatmul.f32.gmra.mxu0 %v298
    %v2105 = vpop.f32.mrf.mxu0
    %v2106 = vadd.f32 %v2086, %v2105
    %2107 = vdwg.mxu0
    %2108 = vmatpush.xpose.msra.mxu0 0.0
    %2109 = vmatpush.xpose.msra.mxu0 0.0
    %2110 = vmatpush.xpose.msra.mxu0 0.0
    %2111 = vmatpush.xpose.msra.mxu0 0.0
    %2112 = vmatpush.xpose.msra.mxu0 0.0
    %2113 = vmatpush.xpose.msra.mxu0 0.0
    %2114 = vmatpush.xpose.msra.mxu0 0.0
    %2115 = vmatpush.xpose.msra.mxu0 0.0
    %2116 = vmatpush.xpose.msra.mxu0 0.0
    %2117 = vmatpush.xpose.msra.mxu0 0.0
    %2118 = vmatpush.xpose.msra.mxu0 0.0
    %2119 = vmatpush.xpose.msra.mxu0 0.0
    %2120 = vmatpush.xpose.msra.mxu0 0.0
    %2121 = vmatpush.xpose.msra.mxu0 0.0
    %2122 = vmatpush.xpose.msra.mxu0 0.0
    %2123 = vmatpush.xpose.msra.mxu0 %v152
    %2124 = vmatmul.f32.gmra.mxu0 %v299
    %v2125 = vpop.f32.mrf.mxu0
    %v2126 = vadd.f32 %v2106, %v2125
    %2127 = vdwg.mxu0
    %2128 = vmatpush.xpose.msra.mxu0 0.0
    %2129 = vmatpush.xpose.msra.mxu0 0.0
    %2130 = vmatpush.xpose.msra.mxu0 0.0
    %2131 = vmatpush.xpose.msra.mxu0 0.0
    %2132 = vmatpush.xpose.msra.mxu0 0.0
    %2133 = vmatpush.xpose.msra.mxu0 0.0
    %2134 = vmatpush.xpose.msra.mxu0 0.0
    %2135 = vmatpush.xpose.msra.mxu0 0.0
    %2136 = vmatpush.xpose.msra.mxu0 0.0
    %2137 = vmatpush.xpose.msra.mxu0 0.0
    %2138 = vmatpush.xpose.msra.mxu0 0.0
    %2139 = vmatpush.xpose.msra.mxu0 0.0
    %2140 = vmatpush.xpose.msra.mxu0 0.0
    %2141 = vmatpush.xpose.msra.mxu0 0.0
    %2142 = vmatpush.xpose.msra.mxu0 0.0
    %2143 = vmatpush.xpose.msra.mxu0 %v153
    %2144 = vmatmul.f32.gmra.mxu0 %v300
    %v2145 = vpop.f32.mrf.mxu0
    %v2146 = vadd.f32 %v2126, %v2145
    %2147 = vdwg.mxu0
    %2148 = vmatpush.xpose.msra.mxu0 0.0
    %2149 = vmatpush.xpose.msra.mxu0 0.0
    %2150 = vmatpush.xpose.msra.mxu0 0.0
    %2151 = vmatpush.xpose.msra.mxu0 0.0
    %2152 = vmatpush.xpose.msra.mxu0 0.0
    %2153 = vmatpush.xpose.msra.mxu0 0.0
    %2154 = vmatpush.xpose.msra.mxu0 0.0
    %2155 = vmatpush.xpose.msra.mxu0 0.0
    %2156 = vmatpush.xpose.msra.mxu0 0.0
    %2157 = vmatpush.xpose.msra.mxu0 0.0
    %2158 = vmatpush.xpose.msra.mxu0 0.0
    %2159 = vmatpush.xpose.msra.mxu0 0.0
    %2160 = vmatpush.xpose.msra.mxu0 0.0
    %2161 = vmatpush.xpose.msra.mxu0 0.0
    %2162 = vmatpush.xpose.msra.mxu0 0.0
    %2163 = vmatpush.xpose.msra.mxu0 %v154
    %2164 = vmatmul.f32.gmra.mxu0 %v301
    %v2165 = vpop.f32.mrf.mxu0
    %v2166 = vadd.f32 %v2146, %v2165
    %2167 = vdwg.mxu0
    %2168 = vmatpush.xpose.msra.mxu0 0.0
    %2169 = vmatpush.xpose.msra.mxu0 0.0
    %2170 = vmatpush.xpose.msra.mxu0 0.0
    %2171 = vmatpush.xpose.msra.mxu0 0.0
    %2172 = vmatpush.xpose.msra.mxu0 0.0
    %2173 = vmatpush.xpose.msra.mxu0 0.0
    %2174 = vmatpush.xpose.msra.mxu0 0.0
    %2175 = vmatpush.xpose.msra.mxu0 0.0
    %2176 = vmatpush.xpose.msra.mxu0 0.0
    %2177 = vmatpush.xpose.msra.mxu0 0.0
    %2178 = vmatpush.xpose.msra.mxu0 0.0
    %2179 = vmatpush.xpose.msra.mxu0 0.0
    %2180 = vmatpush.xpose.msra.mxu0 0.0
    %2181 = vmatpush.xpose.msra.mxu0 0.0
    %2182 = vmatpush.xpose.msra.mxu0 0.0
    %2183 = vmatpush.xpose.msra.mxu0 %v155
    %2184 = vmatmul.f32.gmra.mxu0 %v304
    %v2185 = vpop.f32.mrf.mxu0
    %v2186 = vadd.f32 %v2166, %v2185
    %2187 = vdwg.mxu0
    %2188 = vmatpush.xpose.msra.mxu0 0.0
    %2189 = vmatpush.xpose.msra.mxu0 0.0
    %2190 = vmatpush.xpose.msra.mxu0 0.0
    %2191 = vmatpush.xpose.msra.mxu0 0.0
    %2192 = vmatpush.xpose.msra.mxu0 0.0
    %2193 = vmatpush.xpose.msra.mxu0 0.0
    %2194 = vmatpush.xpose.msra.mxu0 0.0
    %2195 = vmatpush.xpose.msra.mxu0 0.0
    %2196 = vmatpush.xpose.msra.mxu0 0.0
    %2197 = vmatpush.xpose.msra.mxu0 0.0
    %2198 = vmatpush.xpose.msra.mxu0 0.0
    %2199 = vmatpush.xpose.msra.mxu0 0.0
    %2200 = vmatpush.xpose.msra.mxu0 0.0
    %2201 = vmatpush.xpose.msra.mxu0 0.0
    %2202 = vmatpush.xpose.msra.mxu0 0.0
    %2203 = vmatpush.xpose.msra.mxu0 %v156
    %2204 = vmatmul.f32.gmra.mxu0 %v305
    %v2205 = vpop.f32.mrf.mxu0
    %v2206 = vadd.f32 %v2186, %v2205
    %2207 = vdwg.mxu0
    %2208 = vmatpush.xpose.msra.mxu0 0.0
    %2209 = vmatpush.xpose.msra.mxu0 0.0
    %2210 = vmatpush.xpose.msra.mxu0 0.0
    %2211 = vmatpush.xpose.msra.mxu0 0.0
    %2212 = vmatpush.xpose.msra.mxu0 0.0
    %2213 = vmatpush.xpose.msra.mxu0 0.0
    %2214 = vmatpush.xpose.msra.mxu0 0.0
    %2215 = vmatpush.xpose.msra.mxu0 0.0
    %2216 = vmatpush.xpose.msra.mxu0 0.0
    %2217 = vmatpush.xpose.msra.mxu0 0.0
    %2218 = vmatpush.xpose.msra.mxu0 0.0
    %2219 = vmatpush.xpose.msra.mxu0 0.0
    %2220 = vmatpush.xpose.msra.mxu0 0.0
    %2221 = vmatpush.xpose.msra.mxu0 0.0
    %2222 = vmatpush.xpose.msra.mxu0 0.0
    %2223 = vmatpush.xpose.msra.mxu0 %v157
    %2224 = vmatmul.f32.gmra.mxu0 %v306
    %v2225 = vpop.f32.mrf.mxu0
    %v2226 = vadd.f32 %v2206, %v2225
    %2227 = vdwg.mxu0
    %2228 = vmatpush.xpose.msra.mxu0 0.0
    %2229 = vmatpush.xpose.msra.mxu0 0.0
    %2230 = vmatpush.xpose.msra.mxu0 0.0
    %2231 = vmatpush.xpose.msra.mxu0 0.0
    %2232 = vmatpush.xpose.msra.mxu0 0.0
    %2233 = vmatpush.xpose.msra.mxu0 0.0
    %2234 = vmatpush.xpose.msra.mxu0 0.0
    %2235 = vmatpush.xpose.msra.mxu0 0.0
    %2236 = vmatpush.xpose.msra.mxu0 0.0
    %2237 = vmatpush.xpose.msra.mxu0 0.0
    %2238 = vmatpush.xpose.msra.mxu0 0.0
    %2239 = vmatpush.xpose.msra.mxu0 0.0
    %2240 = vmatpush.xpose.msra.mxu0 0.0
    %2241 = vmatpush.xpose.msra.mxu0 0.0
    %2242 = vmatpush.xpose.msra.mxu0 0.0
    %2243 = vmatpush.xpose.msra.mxu0 %v158
    %2244 = vmatmul.f32.gmra.mxu0 %v307
    %v2245 = vpop.f32.mrf.mxu0
    %v2246 = vadd.f32 %v2226, %v2245
    %2247 = vdwg.mxu0
    %2248 = vmatpush.xpose.msra.mxu0 0.0
    %2249 = vmatpush.xpose.msra.mxu0 0.0
    %2250 = vmatpush.xpose.msra.mxu0 0.0
    %2251 = vmatpush.xpose.msra.mxu0 0.0
    %2252 = vmatpush.xpose.msra.mxu0 0.0
    %2253 = vmatpush.xpose.msra.mxu0 0.0
    %2254 = vmatpush.xpose.msra.mxu0 0.0
    %2255 = vmatpush.xpose.msra.mxu0 0.0
    %2256 = vmatpush.xpose.msra.mxu0 0.0
    %2257 = vmatpush.xpose.msra.mxu0 0.0
    %2258 = vmatpush.xpose.msra.mxu0 0.0
    %2259 = vmatpush.xpose.msra.mxu0 0.0
    %2260 = vmatpush.xpose.msra.mxu0 0.0
    %2261 = vmatpush.xpose.msra.mxu0 0.0
    %2262 = vmatpush.xpose.msra.mxu0 0.0
    %2263 = vmatpush.xpose.msra.mxu0 %v159
    %2264 = vmatmul.f32.gmra.mxu0 %v308
    %v2265 = vpop.f32.mrf.mxu0
    %v2266 = vadd.f32 %v2246, %v2265
    %2267 = vdwg.mxu0
    %2268 = vmatpush.xpose.msra.mxu0 0.0
    %2269 = vmatpush.xpose.msra.mxu0 0.0
    %2270 = vmatpush.xpose.msra.mxu0 0.0
    %2271 = vmatpush.xpose.msra.mxu0 0.0
    %2272 = vmatpush.xpose.msra.mxu0 0.0
    %2273 = vmatpush.xpose.msra.mxu0 0.0
    %2274 = vmatpush.xpose.msra.mxu0 0.0
    %2275 = vmatpush.xpose.msra.mxu0 0.0
    %2276 = vmatpush.xpose.msra.mxu0 0.0
    %2277 = vmatpush.xpose.msra.mxu0 0.0
    %2278 = vmatpush.xpose.msra.mxu0 0.0
    %2279 = vmatpush.xpose.msra.mxu0 0.0
    %2280 = vmatpush.xpose.msra.mxu0 0.0
    %2281 = vmatpush.xpose.msra.mxu0 0.0
    %2282 = vmatpush.xpose.msra.mxu0 0.0
    %2283 = vmatpush.xpose.msra.mxu0 %v160
    %2284 = vmatmul.f32.gmra.mxu0 %v309
    %v2285 = vpop.f32.mrf.mxu0
    %v2286 = vadd.f32 %v2266, %v2285
    %2287 = vdwg.mxu0
    %2288 = vmatpush.xpose.msra.mxu0 0.0
    %2289 = vmatpush.xpose.msra.mxu0 0.0
    %2290 = vmatpush.xpose.msra.mxu0 0.0
    %2291 = vmatpush.xpose.msra.mxu0 0.0
    %2292 = vmatpush.xpose.msra.mxu0 0.0
    %2293 = vmatpush.xpose.msra.mxu0 0.0
    %2294 = vmatpush.xpose.msra.mxu0 0.0
    %2295 = vmatpush.xpose.msra.mxu0 0.0
    %2296 = vmatpush.xpose.msra.mxu0 0.0
    %2297 = vmatpush.xpose.msra.mxu0 0.0
    %2298 = vmatpush.xpose.msra.mxu0 0.0
    %2299 = vmatpush.xpose.msra.mxu0 0.0
    %2300 = vmatpush.xpose.msra.mxu0 0.0
    %2301 = vmatpush.xpose.msra.mxu0 0.0
    %2302 = vmatpush.xpose.msra.mxu0 0.0
    %2303 = vmatpush.xpose.msra.mxu0 %v161
    %2304 = vmatmul.f32.gmra.mxu0 %v310
    %v2305 = vpop.f32.mrf.mxu0
    %v2306 = vadd.f32 %v2286, %v2305
    %2307 = vdwg.mxu0
    %2308 = vmatpush.xpose.msra.mxu0 0.0
    %2309 = vmatpush.xpose.msra.mxu0 0.0
    %2310 = vmatpush.xpose.msra.mxu0 0.0
    %2311 = vmatpush.xpose.msra.mxu0 0.0
    %2312 = vmatpush.xpose.msra.mxu0 0.0
    %2313 = vmatpush.xpose.msra.mxu0 0.0
    %2314 = vmatpush.xpose.msra.mxu0 0.0
    %2315 = vmatpush.xpose.msra.mxu0 0.0
    %2316 = vmatpush.xpose.msra.mxu0 0.0
    %2317 = vmatpush.xpose.msra.mxu0 0.0
    %2318 = vmatpush.xpose.msra.mxu0 0.0
    %2319 = vmatpush.xpose.msra.mxu0 0.0
    %2320 = vmatpush.xpose.msra.mxu0 0.0
    %2321 = vmatpush.xpose.msra.mxu0 0.0
    %2322 = vmatpush.xpose.msra.mxu0 0.0
    %2323 = vmatpush.xpose.msra.mxu0 %v162
    %2324 = vmatmul.f32.gmra.mxu0 %v311
    %v2325 = vpop.f32.mrf.mxu0
    %v2326 = vadd.f32 %v2306, %v2325
    %2327 = vdwg.mxu0
    %vm2328 = vcmask 41984
    %2329 = vst.msk [vmem:[#allocation7] sm:$0x3] %vm2328, %v2326
    // Predicated region
    $region22: #{tpu_custom_call.1} parent=1 // pred_check
      _
    $region23: #{tpu_custom_call.1} parent=1 // pred_check_branch
      %2331 = sbr.rel (0) target = $region25
    $region24: #{tpu_custom_call.1} parent=1 // pred_region
      %2333 = vsyncadd [#allocation4], 0
      %s2335 = sshll.u32 [#allocation7], 4
      %s2336 = int_to_ptr.vmem [resolvable:$true] %s2335
      %s2337 = sshll.u32 %s3, 4
      %s2338 = int_to_ptr.hbm [resolvable:$true] %s2337
      %2340 = dma.vmem_to_hbm [thread:$0]  %s2336, 32, %s2338, [#allocation4]
    $region25: #{tpu_custom_call.1} parent=1 // pred_fallthru
      _
    // Predicated region
    $region26: #{tpu_custom_call.1} parent=1 // pred_check
      _
    $region27: #{tpu_custom_call.1} parent=1 // pred_check_branch
      %2342 = sbr.rel (0) target = $region29
    $region28: #{tpu_custom_call.1} parent=1 // pred_region
      %2344 = dma.done [#allocation4], 32
    $region29: #{tpu_custom_call.1} parent=1 // pred_fallthru
      _
    %2345 = vsyncpa [#allocation3], 1
    %2346 = vsyncpa [#allocation6], 1
    %2347 = vsyncpa [#allocation4], 1

</llo_original>
